<compile_context>
chip_gen: v7x
topology: tpu7x:2x2x1
jax: 0.10.0
libtpu: 0.0.40
codegen_flags: <defaults>
</compile_context>

<pallas_src>
import jax
import jax.numpy as jnp
from jax.experimental import pallas as pl
from jax.experimental.pallas import tpu as pltpu


def qrnn_kernel(x_ref, h0_ref, c0_ref,
                w1_ref, b1_ref,
                wih_ref, whh_ref, b_lstm_ref,
                w2_ref, b2_ref,
                y_ref, nh_ref, nc_ref,
                hs_sc):
    B, T, D_in = x_ref.shape
    H = nh_ref.shape[-1]

    # ---- x-path hoisted out of the recurrence: two batched MXU matmuls ----
    # Batch-major flat rows (row = b*T + t) so the final y reshape is transpose-free.
    x_all = x_ref[...].reshape(B * T, D_in)
    emb = jnp.dot(x_all, w1_ref[...], preferred_element_type=jnp.float32) + b1_ref[...]
    emb = jnp.maximum(emb, 0.0)                                   # (B*T, 64)
    # Pre-add both LSTM biases here so the loop body carries no bias broadcasts.
    xg = (jnp.dot(emb, wih_ref[...], preferred_element_type=jnp.float32)
          + b_lstm_ref[...])                                      # (B*T, 4H)
    xg = xg.reshape(B, T, 4 * H)                                  # (B, T, 4H)

    # Load recurrent weights / state once before the loop.
    whh = whh_ref[...]                                            # (H, 4H)
    h = h0_ref[0]                                                 # (B, H)
    c = c0_ref[0]                                                 # (B, H)

    # ---- LSTM recurrence: fully-unrolled static time loop (only h@W_hh per step) ----
    for t in range(T):
        gates = xg[:, t, :] + jnp.dot(h, whh, preferred_element_type=jnp.float32)
        i_g = jax.nn.sigmoid(gates[:, 0 * H:1 * H])               # PyTorch gate order
        f_g = jax.nn.sigmoid(gates[:, 1 * H:2 * H])               # i, f, g, o
        g_g = jnp.tanh(gates[:, 2 * H:3 * H])
        o_g = jax.nn.sigmoid(gates[:, 3 * H:4 * H])
        c = f_g * c + i_g * g_g
        h = o_g * jnp.tanh(c)
        # Stash h into the VMEM hidden-state slab (static row writes, batch-major).
        for b in range(B):
            hs_sc[pl.ds(b * T + t, 1), :] = h[b:b + 1, :]

    nh_ref[0] = h
    nc_ref[0] = c

    # ---- Linear2 batched over all (B*T) rows; single write of the full output ----
    y = (jnp.dot(hs_sc[...], w2_ref[...], preferred_element_type=jnp.float32)
         + b2_ref[...])                                           # (B*T, A)
    y_ref[...] = y.reshape(B, T, -1)                              # batch-first (B, T, A)


def qrnn_forward(params, x, h, c):
    """x: (B, T, D_in) f32 (batch_first like the PyTorch module), h/c: (1, B, H) f32.
    Returns (y, new_h, new_c) with y: (B, T, A), new_h/new_c: (1, B, H)."""
    B, T, D_in = x.shape
    H = params["w_hh"].shape[0]
    A = params["w2"].shape[1]

    vmem = pl.BlockSpec(memory_space=pltpu.MemorySpace.VMEM)      # whole array in VMEM

    y, new_h, new_c = pl.pallas_call(
        qrnn_kernel,
        out_shape=(
            jax.ShapeDtypeStruct((B, T, A), jnp.float32),
            jax.ShapeDtypeStruct((1, B, H), jnp.float32),
            jax.ShapeDtypeStruct((1, B, H), jnp.float32),
        ),
        in_specs=[vmem] * 10,
        out_specs=(vmem, vmem, vmem),
        scratch_shapes=[pltpu.VMEM((B * T, H), jnp.float32)],      # hidden-state slab
    )(x, h, c,
      params["w1"], params["b1"],
      params["w_ih"], params["w_hh"], params["b_lstm"],
      params["w2"], params["b2"])
    return y, new_h, new_c


def init_params(key, input_dim, output_dim, hidden=64):
    """Deterministic init mimicking PyTorch default uniform(-1/sqrt(fan), 1/sqrt(fan))."""
    ks = jax.random.split(key, 8)

    def u(k, shape, fan):
        bound = 1.0 / jnp.sqrt(float(fan))
        return jax.random.uniform(k, shape, jnp.float32, -bound, bound)

    return {
        "w1": u(ks[0], (input_dim, hidden), input_dim),
        "b1": u(ks[1], (1, hidden), input_dim),
        "w_ih": u(ks[2], (hidden, 4 * hidden), hidden),
        "w_hh": u(ks[3], (hidden, 4 * hidden), hidden),
        # b_ih + b_hh folded into one bias row (PyTorch adds both).
        "b_lstm": u(ks[4], (1, 4 * hidden), hidden) + u(ks[5], (1, 4 * hidden), hidden),
        "w2": u(ks[6], (hidden, output_dim), hidden),
        "b2": u(ks[7], (1, output_dim), hidden),
    }


def qrnn_reference(params, x, h, c):
    """Pure-JAX reference of the PyTorch forward pass (for verification)."""
    H = params["w_hh"].shape[0]
    emb = jnp.maximum(x @ params["w1"] + params["b1"], 0.0)       # (B, T, 64)

    def step(carry, x_t):
        h_t, c_t = carry
        gates = x_t @ params["w_ih"] + h_t @ params["w_hh"] + params["b_lstm"]
        i = jax.nn.sigmoid(gates[:, 0 * H:1 * H])
        f = jax.nn.sigmoid(gates[:, 1 * H:2 * H])
        g = jnp.tanh(gates[:, 2 * H:3 * H])
        o = jax.nn.sigmoid(gates[:, 3 * H:4 * H])
        c_n = f * c_t + i * g
        h_n = o * jnp.tanh(c_n)
        return (h_n, c_n), h_n

    (hF, cF), hs = jax.lax.scan(step, (h[0], c[0]), jnp.transpose(emb, (1, 0, 2)))
    hs = jnp.transpose(hs, (1, 0, 2))                             # (B, T, 64)
    y = hs @ params["w2"] + params["b2"]
    return y, hF[None], cF[None]


if __name__ == "__main__":
    B, T, D_in, A, H = 2, 8, 4, 4, 64

    key = jax.random.PRNGKey(0)
    k_p, k_x = jax.random.split(key)
    params = init_params(k_p, D_in, A, H)

    x = jax.random.normal(k_x, (B, T, D_in), jnp.float32)
    h0 = jnp.zeros((1, B, H), jnp.float32)
    c0 = jnp.zeros((1, B, H), jnp.float32)

    y, new_h, new_c = jax.block_until_ready(qrnn_forward(params, x, h0, c0))

    y_ref, h_ref, c_ref = qrnn_reference(params, x, h0, c0)
    assert jnp.allclose(y, y_ref, atol=1e-3, rtol=1e-3)
    assert jnp.allclose(new_h, h_ref, atol=1e-3, rtol=1e-3)
    assert jnp.allclose(new_c, c_ref, atol=1e-3, rtol=1e-3)

    print("KERNEL_OK")
</pallas_src>

<mosaic_0001>
module attributes {stable_mosaic.version = 11 : i64} {
  func.func @qrnn_kernel(%arg0: memref<2x8x4xf32, #tpu.memory_space<vmem>>, %arg1: memref<1x2x64xf32, #tpu.memory_space<vmem>>, %arg2: memref<1x2x64xf32, #tpu.memory_space<vmem>>, %arg3: memref<4x64xf32, #tpu.memory_space<vmem>>, %arg4: memref<1x64xf32, #tpu.memory_space<vmem>>, %arg5: memref<64x256xf32, #tpu.memory_space<vmem>>, %arg6: memref<64x256xf32, #tpu.memory_space<vmem>>, %arg7: memref<1x256xf32, #tpu.memory_space<vmem>>, %arg8: memref<64x4xf32, #tpu.memory_space<vmem>>, %arg9: memref<1x4xf32, #tpu.memory_space<vmem>>, %arg10: memref<2x8x4xf32, #tpu.memory_space<vmem>>, %arg11: memref<1x2x64xf32, #tpu.memory_space<vmem>>, %arg12: memref<1x2x64xf32, #tpu.memory_space<vmem>>, %arg13: memref<16x64xf32, #tpu.memory_space<vmem>>) attributes {dimension_semantics = [], scalar_prefetch = 0 : i64, scratch_operands = 1 : i64, tpu.core_type = #tpu.core_type<tc>} {
    %c0 = arith.constant 0 : index
    %c0_0 = arith.constant 0 : index
    %c0_1 = arith.constant 0 : index
    %0 = vector.load %arg0[%c0, %c0_0, %c0_1] : memref<2x8x4xf32, #tpu.memory_space<vmem>>, vector<2x8x4xf32>
    %1 = vector.shape_cast %0 : vector<2x8x4xf32> to vector<16x4xf32>
    %c0_2 = arith.constant 0 : index
    %c0_3 = arith.constant 0 : index
    %2 = vector.load %arg3[%c0_2, %c0_3] : memref<4x64xf32, #tpu.memory_space<vmem>>, vector<4x64xf32>
    %cst = arith.constant dense<0.000000e+00> : vector<16x64xf32>
    %3 = tpu.matmul %1, %2, %cst {dimension_numbers = #tpu.dot_dimension_numbers<[1], [0], [0], [1], [0, 0, 1, 1], [], []>} : vector<16x4xf32>, vector<4x64xf32>, vector<16x64xf32> -> vector<16x64xf32>
    %c0_4 = arith.constant 0 : index
    %c0_5 = arith.constant 0 : index
    %4 = vector.load %arg4[%c0_4, %c0_5] : memref<1x64xf32, #tpu.memory_space<vmem>>, vector<1x64xf32>
    %5 = vector.broadcast %4 : vector<1x64xf32> to vector<16x64xf32>
    %6 = arith.addf %3, %5 : vector<16x64xf32>
    %cst_6 = arith.constant 0.000000e+00 : f32
    %7 = vector.broadcast %cst_6 : f32 to vector<16x64xf32>
    %8 = arith.maximumf %6, %7 : vector<16x64xf32>
    %c0_7 = arith.constant 0 : index
    %c0_8 = arith.constant 0 : index
    %9 = vector.load %arg5[%c0_7, %c0_8] : memref<64x256xf32, #tpu.memory_space<vmem>>, vector<64x256xf32>
    %cst_9 = arith.constant dense<0.000000e+00> : vector<16x256xf32>
    %10 = tpu.matmul %8, %9, %cst_9 {dimension_numbers = #tpu.dot_dimension_numbers<[1], [0], [0], [1], [0, 0, 1, 1], [], []>} : vector<16x64xf32>, vector<64x256xf32>, vector<16x256xf32> -> vector<16x256xf32>
    %c0_10 = arith.constant 0 : index
    %c0_11 = arith.constant 0 : index
    %11 = vector.load %arg7[%c0_10, %c0_11] : memref<1x256xf32, #tpu.memory_space<vmem>>, vector<1x256xf32>
    %12 = vector.broadcast %11 : vector<1x256xf32> to vector<16x256xf32>
    %13 = arith.addf %10, %12 : vector<16x256xf32>
    %14 = vector.shape_cast %13 : vector<16x256xf32> to vector<2x8x256xf32>
    %c0_12 = arith.constant 0 : index
    %c0_13 = arith.constant 0 : index
    %15 = vector.load %arg6[%c0_12, %c0_13] : memref<64x256xf32, #tpu.memory_space<vmem>>, vector<64x256xf32>
    %c0_14 = arith.constant 0 : index
    %c0_15 = arith.constant 0 : index
    %c0_16 = arith.constant 0 : index
    %16 = vector.load %arg1[%c0_14, %c0_15, %c0_16] : memref<1x2x64xf32, #tpu.memory_space<vmem>>, vector<1x2x64xf32>
    %17 = vector.shape_cast %16 : vector<1x2x64xf32> to vector<2x64xf32>
    %c0_17 = arith.constant 0 : index
    %c0_18 = arith.constant 0 : index
    %c0_19 = arith.constant 0 : index
    %18 = vector.load %arg2[%c0_17, %c0_18, %c0_19] : memref<1x2x64xf32, #tpu.memory_space<vmem>>, vector<1x2x64xf32>
    %19 = vector.shape_cast %18 : vector<1x2x64xf32> to vector<2x64xf32>
    %20 = vector.extract_strided_slice %14 {offsets = [0, 0, 0], sizes = [2, 1, 256], strides = [1, 1, 1]} : vector<2x8x256xf32> to vector<2x1x256xf32>
    %21 = vector.shape_cast %20 : vector<2x1x256xf32> to vector<2x256xf32>
    %cst_20 = arith.constant dense<0.000000e+00> : vector<2x256xf32>
    %22 = tpu.matmul %17, %15, %cst_20 {dimension_numbers = #tpu.dot_dimension_numbers<[1], [0], [0], [1], [0, 0, 1, 1], [], []>} : vector<2x64xf32>, vector<64x256xf32>, vector<2x256xf32> -> vector<2x256xf32>
    %23 = arith.addf %21, %22 : vector<2x256xf32>
    %24 = vector.extract_strided_slice %23 {offsets = [0, 0], sizes = [2, 64], strides = [1, 1]} : vector<2x256xf32> to vector<2x64xf32>
    %25 = arith.negf %24 : vector<2x64xf32>
    %26 = math.exp %25 : vector<2x64xf32>
    %cst_21 = arith.constant 1.000000e+00 : f32
    %27 = vector.broadcast %cst_21 : f32 to vector<2x64xf32>
    %28 = arith.addf %27, %26 : vector<2x64xf32>
    %29 = arith.divf %27, %28 : vector<2x64xf32>
    %30 = vector.extract_strided_slice %23 {offsets = [0, 64], sizes = [2, 64], strides = [1, 1]} : vector<2x256xf32> to vector<2x64xf32>
    %31 = arith.negf %30 : vector<2x64xf32>
    %32 = math.exp %31 : vector<2x64xf32>
    %cst_22 = arith.constant 1.000000e+00 : f32
    %33 = vector.broadcast %cst_22 : f32 to vector<2x64xf32>
    %34 = arith.addf %33, %32 : vector<2x64xf32>
    %35 = arith.divf %33, %34 : vector<2x64xf32>
    %36 = vector.extract_strided_slice %23 {offsets = [0, 128], sizes = [2, 64], strides = [1, 1]} : vector<2x256xf32> to vector<2x64xf32>
    %37 = math.tanh %36 : vector<2x64xf32>
    %38 = vector.extract_strided_slice %23 {offsets = [0, 192], sizes = [2, 64], strides = [1, 1]} : vector<2x256xf32> to vector<2x64xf32>
    %39 = arith.negf %38 : vector<2x64xf32>
    %40 = math.exp %39 : vector<2x64xf32>
    %cst_23 = arith.constant 1.000000e+00 : f32
    %41 = vector.broadcast %cst_23 : f32 to vector<2x64xf32>
    %42 = arith.addf %41, %40 : vector<2x64xf32>
    %43 = arith.divf %41, %42 : vector<2x64xf32>
    %44 = arith.mulf %35, %19 : vector<2x64xf32>
    %45 = arith.mulf %29, %37 : vector<2x64xf32>
    %46 = arith.addf %44, %45 : vector<2x64xf32>
    %47 = math.tanh %46 : vector<2x64xf32>
    %48 = arith.mulf %43, %47 : vector<2x64xf32>
    %49 = vector.extract_strided_slice %48 {offsets = [0, 0], sizes = [1, 64], strides = [1, 1]} : vector<2x64xf32> to vector<1x64xf32>
    %c0_24 = arith.constant 0 : index
    %c0_25 = arith.constant 0 : index
    %50 = vector.load %arg13[%c0_24, %c0_25] : memref<16x64xf32, #tpu.memory_space<vmem>>, vector<1x64xf32>
    tpu.vector_store %arg13[%c0_24, %c0_25], %49 {strides = array<i32>} : memref<16x64xf32, #tpu.memory_space<vmem>>, vector<1x64xf32>,
    %51 = vector.extract_strided_slice %48 {offsets = [1, 0], sizes = [1, 64], strides = [1, 1]} : vector<2x64xf32> to vector<1x64xf32>
    %c8 = arith.constant 8 : index
    %c0_26 = arith.constant 0 : index
    %52 = vector.load %arg13[%c8, %c0_26] : memref<16x64xf32, #tpu.memory_space<vmem>>, vector<1x64xf32>
    tpu.vector_store %arg13[%c8, %c0_26], %51 {strides = array<i32>} : memref<16x64xf32, #tpu.memory_space<vmem>>, vector<1x64xf32>,
    %53 = vector.extract_strided_slice %14 {offsets = [0, 1, 0], sizes = [2, 1, 256], strides = [1, 1, 1]} : vector<2x8x256xf32> to vector<2x1x256xf32>
    %54 = vector.shape_cast %53 : vector<2x1x256xf32> to vector<2x256xf32>
    %cst_27 = arith.constant dense<0.000000e+00> : vector<2x256xf32>
    %55 = tpu.matmul %48, %15, %cst_27 {dimension_numbers = #tpu.dot_dimension_numbers<[1], [0], [0], [1], [0, 0, 1, 1], [], []>} : vector<2x64xf32>, vector<64x256xf32>, vector<2x256xf32> -> vector<2x256xf32>
    %56 = arith.addf %54, %55 : vector<2x256xf32>
    %57 = vector.extract_strided_slice %56 {offsets = [0, 0], sizes = [2, 64], strides = [1, 1]} : vector<2x256xf32> to vector<2x64xf32>
    %58 = arith.negf %57 : vector<2x64xf32>
    %59 = math.exp %58 : vector<2x64xf32>
    %cst_28 = arith.constant 1.000000e+00 : f32
    %60 = vector.broadcast %cst_28 : f32 to vector<2x64xf32>
    %61 = arith.addf %60, %59 : vector<2x64xf32>
    %62 = arith.divf %60, %61 : vector<2x64xf32>
    %63 = vector.extract_strided_slice %56 {offsets = [0, 64], sizes = [2, 64], strides = [1, 1]} : vector<2x256xf32> to vector<2x64xf32>
    %64 = arith.negf %63 : vector<2x64xf32>
    %65 = math.exp %64 : vector<2x64xf32>
    %cst_29 = arith.constant 1.000000e+00 : f32
    %66 = vector.broadcast %cst_29 : f32 to vector<2x64xf32>
    %67 = arith.addf %66, %65 : vector<2x64xf32>
    %68 = arith.divf %66, %67 : vector<2x64xf32>
    %69 = vector.extract_strided_slice %56 {offsets = [0, 128], sizes = [2, 64], strides = [1, 1]} : vector<2x256xf32> to vector<2x64xf32>
    %70 = math.tanh %69 : vector<2x64xf32>
    %71 = vector.extract_strided_slice %56 {offsets = [0, 192], sizes = [2, 64], strides = [1, 1]} : vector<2x256xf32> to vector<2x64xf32>
    %72 = arith.negf %71 : vector<2x64xf32>
    %73 = math.exp %72 : vector<2x64xf32>
    %cst_30 = arith.constant 1.000000e+00 : f32
    %74 = vector.broadcast %cst_30 : f32 to vector<2x64xf32>
    %75 = arith.addf %74, %73 : vector<2x64xf32>
    %76 = arith.divf %74, %75 : vector<2x64xf32>
    %77 = arith.mulf %68, %46 : vector<2x64xf32>
    %78 = arith.mulf %62, %70 : vector<2x64xf32>
    %79 = arith.addf %77, %78 : vector<2x64xf32>
    %80 = math.tanh %79 : vector<2x64xf32>
    %81 = arith.mulf %76, %80 : vector<2x64xf32>
    %82 = vector.extract_strided_slice %81 {offsets = [0, 0], sizes = [1, 64], strides = [1, 1]} : vector<2x64xf32> to vector<1x64xf32>
    %c1 = arith.constant 1 : index
    %c0_31 = arith.constant 0 : index
    %83 = vector.load %arg13[%c1, %c0_31] : memref<16x64xf32, #tpu.memory_space<vmem>>, vector<1x64xf32>
    tpu.vector_store %arg13[%c1, %c0_31], %82 {strides = array<i32>} : memref<16x64xf32, #tpu.memory_space<vmem>>, vector<1x64xf32>,
    %84 = vector.extract_strided_slice %81 {offsets = [1, 0], sizes = [1, 64], strides = [1, 1]} : vector<2x64xf32> to vector<1x64xf32>
    %c9 = arith.constant 9 : index
    %c0_32 = arith.constant 0 : index
    %85 = vector.load %arg13[%c9, %c0_32] : memref<16x64xf32, #tpu.memory_space<vmem>>, vector<1x64xf32>
    tpu.vector_store %arg13[%c9, %c0_32], %84 {strides = array<i32>} : memref<16x64xf32, #tpu.memory_space<vmem>>, vector<1x64xf32>,
    %86 = vector.extract_strided_slice %14 {offsets = [0, 2, 0], sizes = [2, 1, 256], strides = [1, 1, 1]} : vector<2x8x256xf32> to vector<2x1x256xf32>
    %87 = vector.shape_cast %86 : vector<2x1x256xf32> to vector<2x256xf32>
    %cst_33 = arith.constant dense<0.000000e+00> : vector<2x256xf32>
    %88 = tpu.matmul %81, %15, %cst_33 {dimension_numbers = #tpu.dot_dimension_numbers<[1], [0], [0], [1], [0, 0, 1, 1], [], []>} : vector<2x64xf32>, vector<64x256xf32>, vector<2x256xf32> -> vector<2x256xf32>
    %89 = arith.addf %87, %88 : vector<2x256xf32>
    %90 = vector.extract_strided_slice %89 {offsets = [0, 0], sizes = [2, 64], strides = [1, 1]} : vector<2x256xf32> to vector<2x64xf32>
    %91 = arith.negf %90 : vector<2x64xf32>
    %92 = math.exp %91 : vector<2x64xf32>
    %cst_34 = arith.constant 1.000000e+00 : f32
    %93 = vector.broadcast %cst_34 : f32 to vector<2x64xf32>
    %94 = arith.addf %93, %92 : vector<2x64xf32>
    %95 = arith.divf %93, %94 : vector<2x64xf32>
    %96 = vector.extract_strided_slice %89 {offsets = [0, 64], sizes = [2, 64], strides = [1, 1]} : vector<2x256xf32> to vector<2x64xf32>
    %97 = arith.negf %96 : vector<2x64xf32>
    %98 = math.exp %97 : vector<2x64xf32>
    %cst_35 = arith.constant 1.000000e+00 : f32
    %99 = vector.broadcast %cst_35 : f32 to vector<2x64xf32>
    %100 = arith.addf %99, %98 : vector<2x64xf32>
    %101 = arith.divf %99, %100 : vector<2x64xf32>
    %102 = vector.extract_strided_slice %89 {offsets = [0, 128], sizes = [2, 64], strides = [1, 1]} : vector<2x256xf32> to vector<2x64xf32>
    %103 = math.tanh %102 : vector<2x64xf32>
    %104 = vector.extract_strided_slice %89 {offsets = [0, 192], sizes = [2, 64], strides = [1, 1]} : vector<2x256xf32> to vector<2x64xf32>
    %105 = arith.negf %104 : vector<2x64xf32>
    %106 = math.exp %105 : vector<2x64xf32>
    %cst_36 = arith.constant 1.000000e+00 : f32
    %107 = vector.broadcast %cst_36 : f32 to vector<2x64xf32>
    %108 = arith.addf %107, %106 : vector<2x64xf32>
    %109 = arith.divf %107, %108 : vector<2x64xf32>
    %110 = arith.mulf %101, %79 : vector<2x64xf32>
    %111 = arith.mulf %95, %103 : vector<2x64xf32>
    %112 = arith.addf %110, %111 : vector<2x64xf32>
    %113 = math.tanh %112 : vector<2x64xf32>
    %114 = arith.mulf %109, %113 : vector<2x64xf32>
    %115 = vector.extract_strided_slice %114 {offsets = [0, 0], sizes = [1, 64], strides = [1, 1]} : vector<2x64xf32> to vector<1x64xf32>
    %c2 = arith.constant 2 : index
    %c0_37 = arith.constant 0 : index
    %116 = vector.load %arg13[%c2, %c0_37] : memref<16x64xf32, #tpu.memory_space<vmem>>, vector<1x64xf32>
    tpu.vector_store %arg13[%c2, %c0_37], %115 {strides = array<i32>} : memref<16x64xf32, #tpu.memory_space<vmem>>, vector<1x64xf32>,
    %117 = vector.extract_strided_slice %114 {offsets = [1, 0], sizes = [1, 64], strides = [1, 1]} : vector<2x64xf32> to vector<1x64xf32>
    %c10 = arith.constant 10 : index
    %c0_38 = arith.constant 0 : index
    %118 = vector.load %arg13[%c10, %c0_38] : memref<16x64xf32, #tpu.memory_space<vmem>>, vector<1x64xf32>
    tpu.vector_store %arg13[%c10, %c0_38], %117 {strides = array<i32>} : memref<16x64xf32, #tpu.memory_space<vmem>>, vector<1x64xf32>,
    %119 = vector.extract_strided_slice %14 {offsets = [0, 3, 0], sizes = [2, 1, 256], strides = [1, 1, 1]} : vector<2x8x256xf32> to vector<2x1x256xf32>
    %120 = vector.shape_cast %119 : vector<2x1x256xf32> to vector<2x256xf32>
    %cst_39 = arith.constant dense<0.000000e+00> : vector<2x256xf32>
    %121 = tpu.matmul %114, %15, %cst_39 {dimension_numbers = #tpu.dot_dimension_numbers<[1], [0], [0], [1], [0, 0, 1, 1], [], []>} : vector<2x64xf32>, vector<64x256xf32>, vector<2x256xf32> -> vector<2x256xf32>
    %122 = arith.addf %120, %121 : vector<2x256xf32>
    %123 = vector.extract_strided_slice %122 {offsets = [0, 0], sizes = [2, 64], strides = [1, 1]} : vector<2x256xf32> to vector<2x64xf32>
    %124 = arith.negf %123 : vector<2x64xf32>
    %125 = math.exp %124 : vector<2x64xf32>
    %cst_40 = arith.constant 1.000000e+00 : f32
    %126 = vector.broadcast %cst_40 : f32 to vector<2x64xf32>
    %127 = arith.addf %126, %125 : vector<2x64xf32>
    %128 = arith.divf %126, %127 : vector<2x64xf32>
    %129 = vector.extract_strided_slice %122 {offsets = [0, 64], sizes = [2, 64], strides = [1, 1]} : vector<2x256xf32> to vector<2x64xf32>
    %130 = arith.negf %129 : vector<2x64xf32>
    %131 = math.exp %130 : vector<2x64xf32>
    %cst_41 = arith.constant 1.000000e+00 : f32
    %132 = vector.broadcast %cst_41 : f32 to vector<2x64xf32>
    %133 = arith.addf %132, %131 : vector<2x64xf32>
    %134 = arith.divf %132, %133 : vector<2x64xf32>
    %135 = vector.extract_strided_slice %122 {offsets = [0, 128], sizes = [2, 64], strides = [1, 1]} : vector<2x256xf32> to vector<2x64xf32>
    %136 = math.tanh %135 : vector<2x64xf32>
    %137 = vector.extract_strided_slice %122 {offsets = [0, 192], sizes = [2, 64], strides = [1, 1]} : vector<2x256xf32> to vector<2x64xf32>
    %138 = arith.negf %137 : vector<2x64xf32>
    %139 = math.exp %138 : vector<2x64xf32>
    %cst_42 = arith.constant 1.000000e+00 : f32
    %140 = vector.broadcast %cst_42 : f32 to vector<2x64xf32>
    %141 = arith.addf %140, %139 : vector<2x64xf32>
    %142 = arith.divf %140, %141 : vector<2x64xf32>
    %143 = arith.mulf %134, %112 : vector<2x64xf32>
    %144 = arith.mulf %128, %136 : vector<2x64xf32>
    %145 = arith.addf %143, %144 : vector<2x64xf32>
    %146 = math.tanh %145 : vector<2x64xf32>
    %147 = arith.mulf %142, %146 : vector<2x64xf32>
    %148 = vector.extract_strided_slice %147 {offsets = [0, 0], sizes = [1, 64], strides = [1, 1]} : vector<2x64xf32> to vector<1x64xf32>
    %c3 = arith.constant 3 : index
    %c0_43 = arith.constant 0 : index
    %149 = vector.load %arg13[%c3, %c0_43] : memref<16x64xf32, #tpu.memory_space<vmem>>, vector<1x64xf32>
    tpu.vector_store %arg13[%c3, %c0_43], %148 {strides = array<i32>} : memref<16x64xf32, #tpu.memory_space<vmem>>, vector<1x64xf32>,
    %150 = vector.extract_strided_slice %147 {offsets = [1, 0], sizes = [1, 64], strides = [1, 1]} : vector<2x64xf32> to vector<1x64xf32>
    %c11 = arith.constant 11 : index
    %c0_44 = arith.constant 0 : index
    %151 = vector.load %arg13[%c11, %c0_44] : memref<16x64xf32, #tpu.memory_space<vmem>>, vector<1x64xf32>
    tpu.vector_store %arg13[%c11, %c0_44], %150 {strides = array<i32>} : memref<16x64xf32, #tpu.memory_space<vmem>>, vector<1x64xf32>,
    %152 = vector.extract_strided_slice %14 {offsets = [0, 4, 0], sizes = [2, 1, 256], strides = [1, 1, 1]} : vector<2x8x256xf32> to vector<2x1x256xf32>
    %153 = vector.shape_cast %152 : vector<2x1x256xf32> to vector<2x256xf32>
    %cst_45 = arith.constant dense<0.000000e+00> : vector<2x256xf32>
    %154 = tpu.matmul %147, %15, %cst_45 {dimension_numbers = #tpu.dot_dimension_numbers<[1], [0], [0], [1], [0, 0, 1, 1], [], []>} : vector<2x64xf32>, vector<64x256xf32>, vector<2x256xf32> -> vector<2x256xf32>
    %155 = arith.addf %153, %154 : vector<2x256xf32>
    %156 = vector.extract_strided_slice %155 {offsets = [0, 0], sizes = [2, 64], strides = [1, 1]} : vector<2x256xf32> to vector<2x64xf32>
    %157 = arith.negf %156 : vector<2x64xf32>
    %158 = math.exp %157 : vector<2x64xf32>
    %cst_46 = arith.constant 1.000000e+00 : f32
    %159 = vector.broadcast %cst_46 : f32 to vector<2x64xf32>
    %160 = arith.addf %159, %158 : vector<2x64xf32>
    %161 = arith.divf %159, %160 : vector<2x64xf32>
    %162 = vector.extract_strided_slice %155 {offsets = [0, 64], sizes = [2, 64], strides = [1, 1]} : vector<2x256xf32> to vector<2x64xf32>
    %163 = arith.negf %162 : vector<2x64xf32>
    %164 = math.exp %163 : vector<2x64xf32>
    %cst_47 = arith.constant 1.000000e+00 : f32
    %165 = vector.broadcast %cst_47 : f32 to vector<2x64xf32>
    %166 = arith.addf %165, %164 : vector<2x64xf32>
    %167 = arith.divf %165, %166 : vector<2x64xf32>
    %168 = vector.extract_strided_slice %155 {offsets = [0, 128], sizes = [2, 64], strides = [1, 1]} : vector<2x256xf32> to vector<2x64xf32>
    %169 = math.tanh %168 : vector<2x64xf32>
    %170 = vector.extract_strided_slice %155 {offsets = [0, 192], sizes = [2, 64], strides = [1, 1]} : vector<2x256xf32> to vector<2x64xf32>
    %171 = arith.negf %170 : vector<2x64xf32>
    %172 = math.exp %171 : vector<2x64xf32>
    %cst_48 = arith.constant 1.000000e+00 : f32
    %173 = vector.broadcast %cst_48 : f32 to vector<2x64xf32>
    %174 = arith.addf %173, %172 : vector<2x64xf32>
    %175 = arith.divf %173, %174 : vector<2x64xf32>
    %176 = arith.mulf %167, %145 : vector<2x64xf32>
    %177 = arith.mulf %161, %169 : vector<2x64xf32>
    %178 = arith.addf %176, %177 : vector<2x64xf32>
    %179 = math.tanh %178 : vector<2x64xf32>
    %180 = arith.mulf %175, %179 : vector<2x64xf32>
    %181 = vector.extract_strided_slice %180 {offsets = [0, 0], sizes = [1, 64], strides = [1, 1]} : vector<2x64xf32> to vector<1x64xf32>
    %c4 = arith.constant 4 : index
    %c0_49 = arith.constant 0 : index
    %182 = vector.load %arg13[%c4, %c0_49] : memref<16x64xf32, #tpu.memory_space<vmem>>, vector<1x64xf32>
    tpu.vector_store %arg13[%c4, %c0_49], %181 {strides = array<i32>} : memref<16x64xf32, #tpu.memory_space<vmem>>, vector<1x64xf32>,
    %183 = vector.extract_strided_slice %180 {offsets = [1, 0], sizes = [1, 64], strides = [1, 1]} : vector<2x64xf32> to vector<1x64xf32>
    %c12 = arith.constant 12 : index
    %c0_50 = arith.constant 0 : index
    %184 = vector.load %arg13[%c12, %c0_50] : memref<16x64xf32, #tpu.memory_space<vmem>>, vector<1x64xf32>
    tpu.vector_store %arg13[%c12, %c0_50], %183 {strides = array<i32>} : memref<16x64xf32, #tpu.memory_space<vmem>>, vector<1x64xf32>,
    %185 = vector.extract_strided_slice %14 {offsets = [0, 5, 0], sizes = [2, 1, 256], strides = [1, 1, 1]} : vector<2x8x256xf32> to vector<2x1x256xf32>
    %186 = vector.shape_cast %185 : vector<2x1x256xf32> to vector<2x256xf32>
    %cst_51 = arith.constant dense<0.000000e+00> : vector<2x256xf32>
    %187 = tpu.matmul %180, %15, %cst_51 {dimension_numbers = #tpu.dot_dimension_numbers<[1], [0], [0], [1], [0, 0, 1, 1], [], []>} : vector<2x64xf32>, vector<64x256xf32>, vector<2x256xf32> -> vector<2x256xf32>
    %188 = arith.addf %186, %187 : vector<2x256xf32>
    %189 = vector.extract_strided_slice %188 {offsets = [0, 0], sizes = [2, 64], strides = [1, 1]} : vector<2x256xf32> to vector<2x64xf32>
    %190 = arith.negf %189 : vector<2x64xf32>
    %191 = math.exp %190 : vector<2x64xf32>
    %cst_52 = arith.constant 1.000000e+00 : f32
    %192 = vector.broadcast %cst_52 : f32 to vector<2x64xf32>
    %193 = arith.addf %192, %191 : vector<2x64xf32>
    %194 = arith.divf %192, %193 : vector<2x64xf32>
    %195 = vector.extract_strided_slice %188 {offsets = [0, 64], sizes = [2, 64], strides = [1, 1]} : vector<2x256xf32> to vector<2x64xf32>
    %196 = arith.negf %195 : vector<2x64xf32>
    %197 = math.exp %196 : vector<2x64xf32>
    %cst_53 = arith.constant 1.000000e+00 : f32
    %198 = vector.broadcast %cst_53 : f32 to vector<2x64xf32>
    %199 = arith.addf %198, %197 : vector<2x64xf32>
    %200 = arith.divf %198, %199 : vector<2x64xf32>
    %201 = vector.extract_strided_slice %188 {offsets = [0, 128], sizes = [2, 64], strides = [1, 1]} : vector<2x256xf32> to vector<2x64xf32>
    %202 = math.tanh %201 : vector<2x64xf32>
    %203 = vector.extract_strided_slice %188 {offsets = [0, 192], sizes = [2, 64], strides = [1, 1]} : vector<2x256xf32> to vector<2x64xf32>
    %204 = arith.negf %203 : vector<2x64xf32>
    %205 = math.exp %204 : vector<2x64xf32>
    %cst_54 = arith.constant 1.000000e+00 : f32
    %206 = vector.broadcast %cst_54 : f32 to vector<2x64xf32>
    %207 = arith.addf %206, %205 : vector<2x64xf32>
    %208 = arith.divf %206, %207 : vector<2x64xf32>
    %209 = arith.mulf %200, %178 : vector<2x64xf32>
    %210 = arith.mulf %194, %202 : vector<2x64xf32>
    %211 = arith.addf %209, %210 : vector<2x64xf32>
    %212 = math.tanh %211 : vector<2x64xf32>
    %213 = arith.mulf %208, %212 : vector<2x64xf32>
    %214 = vector.extract_strided_slice %213 {offsets = [0, 0], sizes = [1, 64], strides = [1, 1]} : vector<2x64xf32> to vector<1x64xf32>
    %c5 = arith.constant 5 : index
    %c0_55 = arith.constant 0 : index
    %215 = vector.load %arg13[%c5, %c0_55] : memref<16x64xf32, #tpu.memory_space<vmem>>, vector<1x64xf32>
    tpu.vector_store %arg13[%c5, %c0_55], %214 {strides = array<i32>} : memref<16x64xf32, #tpu.memory_space<vmem>>, vector<1x64xf32>,
    %216 = vector.extract_strided_slice %213 {offsets = [1, 0], sizes = [1, 64], strides = [1, 1]} : vector<2x64xf32> to vector<1x64xf32>
    %c13 = arith.constant 13 : index
    %c0_56 = arith.constant 0 : index
    %217 = vector.load %arg13[%c13, %c0_56] : memref<16x64xf32, #tpu.memory_space<vmem>>, vector<1x64xf32>
    tpu.vector_store %arg13[%c13, %c0_56], %216 {strides = array<i32>} : memref<16x64xf32, #tpu.memory_space<vmem>>, vector<1x64xf32>,
    %218 = vector.extract_strided_slice %14 {offsets = [0, 6, 0], sizes = [2, 1, 256], strides = [1, 1, 1]} : vector<2x8x256xf32> to vector<2x1x256xf32>
    %219 = vector.shape_cast %218 : vector<2x1x256xf32> to vector<2x256xf32>
    %cst_57 = arith.constant dense<0.000000e+00> : vector<2x256xf32>
    %220 = tpu.matmul %213, %15, %cst_57 {dimension_numbers = #tpu.dot_dimension_numbers<[1], [0], [0], [1], [0, 0, 1, 1], [], []>} : vector<2x64xf32>, vector<64x256xf32>, vector<2x256xf32> -> vector<2x256xf32>
    %221 = arith.addf %219, %220 : vector<2x256xf32>
    %222 = vector.extract_strided_slice %221 {offsets = [0, 0], sizes = [2, 64], strides = [1, 1]} : vector<2x256xf32> to vector<2x64xf32>
    %223 = arith.negf %222 : vector<2x64xf32>
    %224 = math.exp %223 : vector<2x64xf32>
    %cst_58 = arith.constant 1.000000e+00 : f32
    %225 = vector.broadcast %cst_58 : f32 to vector<2x64xf32>
    %226 = arith.addf %225, %224 : vector<2x64xf32>
    %227 = arith.divf %225, %226 : vector<2x64xf32>
    %228 = vector.extract_strided_slice %221 {offsets = [0, 64], sizes = [2, 64], strides = [1, 1]} : vector<2x256xf32> to vector<2x64xf32>
    %229 = arith.negf %228 : vector<2x64xf32>
    %230 = math.exp %229 : vector<2x64xf32>
    %cst_59 = arith.constant 1.000000e+00 : f32
    %231 = vector.broadcast %cst_59 : f32 to vector<2x64xf32>
    %232 = arith.addf %231, %230 : vector<2x64xf32>
    %233 = arith.divf %231, %232 : vector<2x64xf32>
    %234 = vector.extract_strided_slice %221 {offsets = [0, 128], sizes = [2, 64], strides = [1, 1]} : vector<2x256xf32> to vector<2x64xf32>
    %235 = math.tanh %234 : vector<2x64xf32>
    %236 = vector.extract_strided_slice %221 {offsets = [0, 192], sizes = [2, 64], strides = [1, 1]} : vector<2x256xf32> to vector<2x64xf32>
    %237 = arith.negf %236 : vector<2x64xf32>
    %238 = math.exp %237 : vector<2x64xf32>
    %cst_60 = arith.constant 1.000000e+00 : f32
    %239 = vector.broadcast %cst_60 : f32 to vector<2x64xf32>
    %240 = arith.addf %239, %238 : vector<2x64xf32>
    %241 = arith.divf %239, %240 : vector<2x64xf32>
    %242 = arith.mulf %233, %211 : vector<2x64xf32>
    %243 = arith.mulf %227, %235 : vector<2x64xf32>
    %244 = arith.addf %242, %243 : vector<2x64xf32>
    %245 = math.tanh %244 : vector<2x64xf32>
    %246 = arith.mulf %241, %245 : vector<2x64xf32>
    %247 = vector.extract_strided_slice %246 {offsets = [0, 0], sizes = [1, 64], strides = [1, 1]} : vector<2x64xf32> to vector<1x64xf32>
    %c6 = arith.constant 6 : index
    %c0_61 = arith.constant 0 : index
    %248 = vector.load %arg13[%c6, %c0_61] : memref<16x64xf32, #tpu.memory_space<vmem>>, vector<1x64xf32>
    tpu.vector_store %arg13[%c6, %c0_61], %247 {strides = array<i32>} : memref<16x64xf32, #tpu.memory_space<vmem>>, vector<1x64xf32>,
    %249 = vector.extract_strided_slice %246 {offsets = [1, 0], sizes = [1, 64], strides = [1, 1]} : vector<2x64xf32> to vector<1x64xf32>
    %c14 = arith.constant 14 : index
    %c0_62 = arith.constant 0 : index
    %250 = vector.load %arg13[%c14, %c0_62] : memref<16x64xf32, #tpu.memory_space<vmem>>, vector<1x64xf32>
    tpu.vector_store %arg13[%c14, %c0_62], %249 {strides = array<i32>} : memref<16x64xf32, #tpu.memory_space<vmem>>, vector<1x64xf32>,
    %251 = vector.extract_strided_slice %14 {offsets = [0, 7, 0], sizes = [2, 1, 256], strides = [1, 1, 1]} : vector<2x8x256xf32> to vector<2x1x256xf32>
    %252 = vector.shape_cast %251 : vector<2x1x256xf32> to vector<2x256xf32>
    %cst_63 = arith.constant dense<0.000000e+00> : vector<2x256xf32>
    %253 = tpu.matmul %246, %15, %cst_63 {dimension_numbers = #tpu.dot_dimension_numbers<[1], [0], [0], [1], [0, 0, 1, 1], [], []>} : vector<2x64xf32>, vector<64x256xf32>, vector<2x256xf32> -> vector<2x256xf32>
    %254 = arith.addf %252, %253 : vector<2x256xf32>
    %255 = vector.extract_strided_slice %254 {offsets = [0, 0], sizes = [2, 64], strides = [1, 1]} : vector<2x256xf32> to vector<2x64xf32>
    %256 = arith.negf %255 : vector<2x64xf32>
    %257 = math.exp %256 : vector<2x64xf32>
    %cst_64 = arith.constant 1.000000e+00 : f32
    %258 = vector.broadcast %cst_64 : f32 to vector<2x64xf32>
    %259 = arith.addf %258, %257 : vector<2x64xf32>
    %260 = arith.divf %258, %259 : vector<2x64xf32>
    %261 = vector.extract_strided_slice %254 {offsets = [0, 64], sizes = [2, 64], strides = [1, 1]} : vector<2x256xf32> to vector<2x64xf32>
    %262 = arith.negf %261 : vector<2x64xf32>
    %263 = math.exp %262 : vector<2x64xf32>
    %cst_65 = arith.constant 1.000000e+00 : f32
    %264 = vector.broadcast %cst_65 : f32 to vector<2x64xf32>
    %265 = arith.addf %264, %263 : vector<2x64xf32>
    %266 = arith.divf %264, %265 : vector<2x64xf32>
    %267 = vector.extract_strided_slice %254 {offsets = [0, 128], sizes = [2, 64], strides = [1, 1]} : vector<2x256xf32> to vector<2x64xf32>
    %268 = math.tanh %267 : vector<2x64xf32>
    %269 = vector.extract_strided_slice %254 {offsets = [0, 192], sizes = [2, 64], strides = [1, 1]} : vector<2x256xf32> to vector<2x64xf32>
    %270 = arith.negf %269 : vector<2x64xf32>
    %271 = math.exp %270 : vector<2x64xf32>
    %cst_66 = arith.constant 1.000000e+00 : f32
    %272 = vector.broadcast %cst_66 : f32 to vector<2x64xf32>
    %273 = arith.addf %272, %271 : vector<2x64xf32>
    %274 = arith.divf %272, %273 : vector<2x64xf32>
    %275 = arith.mulf %266, %244 : vector<2x64xf32>
    %276 = arith.mulf %260, %268 : vector<2x64xf32>
    %277 = arith.addf %275, %276 : vector<2x64xf32>
    %278 = math.tanh %277 : vector<2x64xf32>
    %279 = arith.mulf %274, %278 : vector<2x64xf32>
    %280 = vector.extract_strided_slice %279 {offsets = [0, 0], sizes = [1, 64], strides = [1, 1]} : vector<2x64xf32> to vector<1x64xf32>
    %c7 = arith.constant 7 : index
    %c0_67 = arith.constant 0 : index
    %281 = vector.load %arg13[%c7, %c0_67] : memref<16x64xf32, #tpu.memory_space<vmem>>, vector<1x64xf32>
    tpu.vector_store %arg13[%c7, %c0_67], %280 {strides = array<i32>} : memref<16x64xf32, #tpu.memory_space<vmem>>, vector<1x64xf32>,
    %282 = vector.extract_strided_slice %279 {offsets = [1, 0], sizes = [1, 64], strides = [1, 1]} : vector<2x64xf32> to vector<1x64xf32>
    %c15 = arith.constant 15 : index
    %c0_68 = arith.constant 0 : index
    %283 = vector.load %arg13[%c15, %c0_68] : memref<16x64xf32, #tpu.memory_space<vmem>>, vector<1x64xf32>
    tpu.vector_store %arg13[%c15, %c0_68], %282 {strides = array<i32>} : memref<16x64xf32, #tpu.memory_space<vmem>>, vector<1x64xf32>,
    %c0_69 = arith.constant 0 : index
    %c0_70 = arith.constant 0 : index
    %c0_71 = arith.constant 0 : index
    %284 = vector.load %arg11[%c0_69, %c0_70, %c0_71] : memref<1x2x64xf32, #tpu.memory_space<vmem>>, vector<1x2x64xf32>
    %285 = vector.shape_cast %284 : vector<1x2x64xf32> to vector<2x64xf32>
    %286 = vector.shape_cast %279 : vector<2x64xf32> to vector<1x2x64xf32>
    tpu.vector_store %arg11[%c0_69, %c0_70, %c0_71], %286 {strides = array<i32>} : memref<1x2x64xf32, #tpu.memory_space<vmem>>, vector<1x2x64xf32>,
    %c0_72 = arith.constant 0 : index
    %c0_73 = arith.constant 0 : index
    %c0_74 = arith.constant 0 : index
    %287 = vector.load %arg12[%c0_72, %c0_73, %c0_74] : memref<1x2x64xf32, #tpu.memory_space<vmem>>, vector<1x2x64xf32>
    %288 = vector.shape_cast %287 : vector<1x2x64xf32> to vector<2x64xf32>
    %289 = vector.shape_cast %277 : vector<2x64xf32> to vector<1x2x64xf32>
    tpu.vector_store %arg12[%c0_72, %c0_73, %c0_74], %289 {strides = array<i32>} : memref<1x2x64xf32, #tpu.memory_space<vmem>>, vector<1x2x64xf32>,
    %c0_75 = arith.constant 0 : index
    %c0_76 = arith.constant 0 : index
    %290 = vector.load %arg13[%c0_75, %c0_76] : memref<16x64xf32, #tpu.memory_space<vmem>>, vector<16x64xf32>
    %c0_77 = arith.constant 0 : index
    %c0_78 = arith.constant 0 : index
    %291 = vector.load %arg8[%c0_77, %c0_78] : memref<64x4xf32, #tpu.memory_space<vmem>>, vector<64x4xf32>
    %cst_79 = arith.constant dense<0.000000e+00> : vector<16x4xf32>
    %292 = tpu.matmul %290, %291, %cst_79 {dimension_numbers = #tpu.dot_dimension_numbers<[1], [0], [0], [1], [0, 0, 1, 1], [], []>} : vector<16x64xf32>, vector<64x4xf32>, vector<16x4xf32> -> vector<16x4xf32>
    %c0_80 = arith.constant 0 : index
    %c0_81 = arith.constant 0 : index
    %293 = vector.load %arg9[%c0_80, %c0_81] : memref<1x4xf32, #tpu.memory_space<vmem>>, vector<1x4xf32>
    %294 = vector.broadcast %293 : vector<1x4xf32> to vector<16x4xf32>
    %295 = arith.addf %292, %294 : vector<16x4xf32>
    %296 = vector.shape_cast %295 : vector<16x4xf32> to vector<2x8x4xf32>
    %c0_82 = arith.constant 0 : index
    %c0_83 = arith.constant 0 : index
    %c0_84 = arith.constant 0 : index
    %297 = vector.load %arg10[%c0_82, %c0_83, %c0_84] : memref<2x8x4xf32, #tpu.memory_space<vmem>>, vector<2x8x4xf32>
    tpu.vector_store %arg10[%c0_82, %c0_83, %c0_84], %296 {strides = array<i32>} : memref<2x8x4xf32, #tpu.memory_space<vmem>>, vector<2x8x4xf32>,
    return
  }
}

</mosaic_0001>

<llo_original>
// kernel: tpu_custom_call.1
$region0: #{tpu_custom_call.1}
  #allocation0 [shape = 'u32[]', space=smem, size = 0x4, offset = 0x4, fixed_abs, tag = 'smem constant byte address 0x4 - core index']
  #allocation1 [shape = 'u32[144,128]{1,0:T(1,128)}', space=vmem, size = 0x12000, scoped, tag = 'internal scratch']
  #allocation2 [shape = 'f32[16,64]{1,0:T(8,128)}', space=vmem, size = 0x2000, scoped, tag = 'scratch operand']
  %s0 = inlined_call_operand.vmem [shape: f32[2,8,4], index: 0, kind: input, shape index: {}]
  %s1 = inlined_call_operand.vmem [shape: f32[1,2,64], index: 1, kind: input, shape index: {}]
  %s2 = inlined_call_operand.vmem [shape: f32[1,2,64], index: 2, kind: input, shape index: {}]
  %s3 = inlined_call_operand.vmem [shape: f32[4,64], index: 3, kind: input, shape index: {}]
  %s4 = inlined_call_operand.vmem [shape: f32[1,64], index: 4, kind: input, shape index: {}]
  %s5 = inlined_call_operand.hbm [shape: f32[64,256], index: 5, kind: input, shape index: {}]
  %s6 = inlined_call_operand.hbm [shape: f32[64,256], index: 6, kind: input, shape index: {}]
  %s7 = inlined_call_operand.vmem [shape: f32[1,256], index: 7, kind: input, shape index: {}]
  %s8 = inlined_call_operand.vmem [shape: f32[64,4], index: 8, kind: input, shape index: {}]
  %s9 = inlined_call_operand.vmem [shape: f32[1,4], index: 9, kind: input, shape index: {}]
  %s10 = inlined_call_operand.vmem [shape: f32[2,8,4], index: 10, kind: output, shape index: {0}]
  %s11 = inlined_call_operand.hbm [shape: f32[1,2,64], index: 11, kind: output, shape index: {1}]
  %s12 = inlined_call_operand.hbm [shape: f32[1,2,64], index: 12, kind: output, shape index: {2}]
  %13 = xla_tuple %s10, %s11, %s12
  %s14 = sld [smem:[#allocation0]]
  $region74: #{tpu_custom_call.1} parent=0
    _
  %s16 = ssub.s32 1, %s14
  %s17 = scalar_select 0, %s16, %s14
  $region1: #{tpu_custom_call.1} parent=0
    #allocation3 [shape = 'u8[65536]{0}', space=vmem, size = 0x10000, scoped, tag = 'input window, operand 5, single buffered']
    #allocation4 [shape = 's32[1]{0}', space=sflag, size = 0x4, scoped, tag = 'scoped memory for tpu_custom_call.1']
    #allocation5 [shape = 's32[1]{0}', space=sflag, size = 0x4, scoped, tag = 'scoped memory for tpu_custom_call.1']
    #allocation6 [shape = 'u8[65536]{0}', space=vmem, size = 0x10000, scoped, tag = 'input window, operand 6, single buffered']
    #allocation7 [shape = 's32[1]{0}', space=sflag, size = 0x4, scoped, tag = 'scoped memory for tpu_custom_call.1']
    #allocation8 [shape = 'u8[1024]{0}', space=vmem, size = 0x400, scoped, tag = 'output window, operand 1, single buffered']
    #allocation9 [shape = 'u8[1024]{0}', space=vmem, size = 0x400, scoped, tag = 'output window, operand 2, single buffered']
    #allocation10 [shape = 's32[1]{0}', space=sflag, size = 0x4, scoped, tag = 'scoped memory for tpu_custom_call.1']
    %18 = vsyncpa [#allocation4], 0
    %19 = vsyncpa [#allocation7], 0
    %20 = vsyncpa [#allocation5], 0
    %21 = vsyncpa [#allocation10], 0
    // Predicated region
    $region2: #{tpu_custom_call.1} parent=1 // pred_check
      _
    $region3: #{tpu_custom_call.1} parent=1 // pred_check_branch
      %23 = sbr.rel (0) target = $region5
    $region4: #{tpu_custom_call.1} parent=1 // pred_region
      _
    $region5: #{tpu_custom_call.1} parent=1 // pred_fallthru
      _
    // Predicated region
    $region6: #{tpu_custom_call.1} parent=1 // pred_check
      _
    $region7: #{tpu_custom_call.1} parent=1 // pred_check_branch
      %25 = sbr.rel (0) target = $region9
    $region8: #{tpu_custom_call.1} parent=1 // pred_region
      _
    $region9: #{tpu_custom_call.1} parent=1 // pred_fallthru
      _
    // Predicated region
    $region10: #{tpu_custom_call.1} parent=1 // pred_check
      _
    $region11: #{tpu_custom_call.1} parent=1 // pred_check_branch
      %27 = sbr.rel (0) target = $region13
    $region12: #{tpu_custom_call.1} parent=1 // pred_region
      _
    $region13: #{tpu_custom_call.1} parent=1 // pred_fallthru
      _
    // Predicated region
    $region14: #{tpu_custom_call.1} parent=1 // pred_check
      _
    $region15: #{tpu_custom_call.1} parent=1 // pred_check_branch
      %29 = sbr.rel (0) target = $region17
    $region16: #{tpu_custom_call.1} parent=1 // pred_region
      _
    $region17: #{tpu_custom_call.1} parent=1 // pred_fallthru
      _
    // Predicated region
    $region18: #{tpu_custom_call.1} parent=1 // pred_check
      _
    $region19: #{tpu_custom_call.1} parent=1 // pred_check_branch
      %31 = sbr.rel (0) target = $region21
    $region20: #{tpu_custom_call.1} parent=1 // pred_region
      _
    $region21: #{tpu_custom_call.1} parent=1 // pred_fallthru
      _
    // Predicated region
    $region22: #{tpu_custom_call.1} parent=1 // pred_check
      _
    $region23: #{tpu_custom_call.1} parent=1 // pred_check_branch
      %33 = sbr.rel (0) target = $region25
    $region24: #{tpu_custom_call.1} parent=1 // pred_region
      %s35 = ssub.s32 2048, 2048
      %36 = vsyncadd [#allocation4], %s35
      %s37 = sshll.u32 [#allocation3], 4
      %s38 = int_to_ptr.vmem [resolvable:$true] %s37
      %43 = dma.hbm_to_vmem [thread:$0]  %s5, 2048, %s38, [#allocation4], 256, 256, 16
    $region25: #{tpu_custom_call.1} parent=1 // pred_fallthru
      _
    // Predicated region
    $region26: #{tpu_custom_call.1} parent=1 // pred_check
      _
    $region27: #{tpu_custom_call.1} parent=1 // pred_check_branch
      %45 = sbr.rel (0) target = $region29
    $region28: #{tpu_custom_call.1} parent=1 // pred_region
      %s47 = ssub.s32 2048, 2048
      %48 = vsyncadd [#allocation7], %s47
      %s49 = sshll.u32 [#allocation6], 4
      %s50 = int_to_ptr.vmem [resolvable:$true] %s49
      %55 = dma.hbm_to_vmem [thread:$0]  %s6, 2048, %s50, [#allocation7], 256, 256, 16
    $region29: #{tpu_custom_call.1} parent=1 // pred_fallthru
      _
    // Predicated region
    $region30: #{tpu_custom_call.1} parent=1 // pred_check
      _
    $region31: #{tpu_custom_call.1} parent=1 // pred_check_branch
      %57 = sbr.rel (0) target = $region33
    $region32: #{tpu_custom_call.1} parent=1 // pred_region
      _
    $region33: #{tpu_custom_call.1} parent=1 // pred_fallthru
      _
    // Predicated region
    $region34: #{tpu_custom_call.1} parent=1 // pred_check
      _
    $region35: #{tpu_custom_call.1} parent=1 // pred_check_branch
      %59 = sbr.rel (0) target = $region37
    $region36: #{tpu_custom_call.1} parent=1 // pred_region
      _
    $region37: #{tpu_custom_call.1} parent=1 // pred_fallthru
      _
    // Predicated region
    $region38: #{tpu_custom_call.1} parent=1 // pred_check
      _
    $region39: #{tpu_custom_call.1} parent=1 // pred_check_branch
      %61 = sbr.rel (0) target = $region41
    $region40: #{tpu_custom_call.1} parent=1 // pred_region
      _
    $region41: #{tpu_custom_call.1} parent=1 // pred_fallthru
      _
    // Predicated region
    $region42: #{tpu_custom_call.1} parent=1 // pred_check
      _
    $region43: #{tpu_custom_call.1} parent=1 // pred_check_branch
      %63 = sbr.rel (0) target = $region45
    $region44: #{tpu_custom_call.1} parent=1 // pred_region
      %64 = dma.done [#allocation4], 2048
    $region45: #{tpu_custom_call.1} parent=1 // pred_fallthru
      _
    // Predicated region
    $region46: #{tpu_custom_call.1} parent=1 // pred_check
      _
    $region47: #{tpu_custom_call.1} parent=1 // pred_check_branch
      %66 = sbr.rel (0) target = $region49
    $region48: #{tpu_custom_call.1} parent=1 // pred_region
      %67 = dma.done [#allocation7], 2048
    $region49: #{tpu_custom_call.1} parent=1 // pred_fallthru
      _
    %v68 = vld [vmem:[%s0] sm:$0xff]
    %v69 = vld [vmem:[%s0 + $0x8] sm:$0xff]
    %v70 = vld [vmem:[%s3] sm:$0xf]
    %v71 = vld [vmem:[%s4] sm:$0x1]
    %v73 = vlaneseq
    %v74 = vshrl.u32 %v73, 7
    %v75 = vsub.s32 0, %v74
    %v76 = vrot.slane %v71, %v75
    %vm78 = vcmask 31744
    %v80 = vsel %vm78, %v68, 0
    %v83 = vsel %vm78, %v69, 0
    %vm85 = vcmask 1043456
    %v87 = vsel %vm85, %v70, 0
    %89 = vmatprep.subr.mxu0 0.0
    %90 = vmatpush1.msra.mxu0 %v87
    %91 = vmatprep.subr.mxu0 0.0
    %92 = vmatpush1.msra.mxu0 0.0
    %93 = vmatprep.subr.mxu0 0.0
    %94 = vmatpush1.msra.mxu0 0.0
    %95 = vmatprep.subr.mxu0 0.0
    %96 = vmatpush1.msra.mxu0 0.0
    %97 = vmatprep.subr.mxu0 0.0
    %98 = vmatpush1.msra.mxu0 0.0
    %99 = vmatprep.subr.mxu0 0.0
    %100 = vmatpush1.msra.mxu0 0.0
    %101 = vmatprep.subr.mxu0 0.0
    %102 = vmatpush1.msra.mxu0 0.0
    %103 = vmatprep.subr.mxu0 0.0
    %104 = vmatpush1.msra.mxu0 0.0
    %105 = vmatprep.subr.mxu0 0.0
    %106 = vmatpush1.msra.mxu0 0.0
    %107 = vmatprep.subr.mxu0 0.0
    %108 = vmatpush1.msra.mxu0 0.0
    %109 = vmatprep.subr.mxu0 0.0
    %110 = vmatpush1.msra.mxu0 0.0
    %111 = vmatprep.subr.mxu0 0.0
    %112 = vmatpush1.msra.mxu0 0.0
    %113 = vmatprep.subr.mxu0 0.0
    %114 = vmatpush1.msra.mxu0 0.0
    %115 = vmatprep.subr.mxu0 0.0
    %116 = vmatpush1.msra.mxu0 0.0
    %117 = vmatprep.subr.mxu0 0.0
    %118 = vmatpush1.msra.mxu0 0.0
    %119 = vmatprep.subr.mxu0 0.0
    %120 = vmatpush1.msra.mxu0 0.0
    %121 = vmatprep.subr.mxu0 0.0
    %122 = vmatpush1.msra.mxu0 0.0
    %123 = vmatprep.subr.mxu0 0.0
    %124 = vmatpush1.msra.mxu0 0.0
    %125 = vmatprep.subr.mxu0 0.0
    %126 = vmatpush1.msra.mxu0 0.0
    %127 = vmatprep.subr.mxu0 0.0
    %128 = vmatpush1.msra.mxu0 0.0
    %129 = vmatprep.subr.mxu0 0.0
    %130 = vmatpush1.msra.mxu0 0.0
    %131 = vmatprep.subr.mxu0 0.0
    %132 = vmatpush1.msra.mxu0 0.0
    %133 = vmatprep.subr.mxu0 0.0
    %134 = vmatpush1.msra.mxu0 0.0
    %135 = vmatprep.subr.mxu0 0.0
    %136 = vmatpush1.msra.mxu0 0.0
    %137 = vmatprep.subr.mxu0 0.0
    %138 = vmatpush1.msra.mxu0 0.0
    %139 = vmatprep.subr.mxu0 0.0
    %140 = vmatpush1.msra.mxu0 0.0
    %141 = vmatprep.subr.mxu0 0.0
    %142 = vmatpush1.msra.mxu0 0.0
    %143 = vmatprep.subr.mxu0 0.0
    %144 = vmatpush1.msra.mxu0 0.0
    %145 = vmatprep.subr.mxu0 0.0
    %146 = vmatpush1.msra.mxu0 0.0
    %147 = vmatprep.subr.mxu0 0.0
    %148 = vmatpush1.msra.mxu0 0.0
    %149 = vmatprep.subr.mxu0 0.0
    %150 = vmatpush1.msra.mxu0 0.0
    %151 = vmatprep.subr.mxu0 0.0
    %152 = vmatpush1.msra.mxu0 0.0
    %153 = vmatprep.mubr.f32.mxu0 0.0
    %154 = vmatmul.mubr.f32.gmra.mrb[0].mxu0 %v80
    %v155 = vpop.f32.mrb[0].mxu0
    %v156 = vadd.f32 %v76, %v155
    %v157 = vpop.f32.mrb[0].mxu0
    %158 = vmatprep.mubr.f32.mxu0 0.0
    %159 = vmatmul.mubr.f32.gmra.mrb[0].mxu0 %v83
    %v160 = vpop.f32.mrb[0].mxu0
    %v161 = vadd.f32 %v76, %v160
    %v162 = vpop.f32.mrb[0].mxu0
    %163 = vdwg.mxu0
    %v164 = vmax.f32 %v156, 0.0
    %v165 = vmax.f32 %v161, 0.0
    %v166 = vld [vmem:[#allocation3] sm:$0xff]
    %v167 = vld [vmem:[#allocation3 + $0x8] sm:$0xff]
    %v168 = vld [vmem:[#allocation3 + $0x10] sm:$0xff]
    %v169 = vld [vmem:[#allocation3 + $0x18] sm:$0xff]
    %v170 = vld [vmem:[#allocation3 + $0x20] sm:$0xff]
    %v171 = vld [vmem:[#allocation3 + $0x28] sm:$0xff]
    %v172 = vld [vmem:[#allocation3 + $0x30] sm:$0xff]
    %v173 = vld [vmem:[#allocation3 + $0x38] sm:$0xff]
    %v174 = vld [vmem:[#allocation3 + $0x40] sm:$0xff]
    %v175 = vld [vmem:[#allocation3 + $0x48] sm:$0xff]
    %v176 = vld [vmem:[#allocation3 + $0x50] sm:$0xff]
    %v177 = vld [vmem:[#allocation3 + $0x58] sm:$0xff]
    %v178 = vld [vmem:[#allocation3 + $0x60] sm:$0xff]
    %v179 = vld [vmem:[#allocation3 + $0x68] sm:$0xff]
    %v180 = vld [vmem:[#allocation3 + $0x70] sm:$0xff]
    %v181 = vld [vmem:[#allocation3 + $0x78] sm:$0xff]
    %v182 = vld [vmem:[%s7] sm:$0x3]
    %v184 = vlaneseq
    %v185 = vshrl.u32 %v184, 7
    %v186 = vsub.s32 0, %v185
    %v187 = vrot.slane %v182, %v186
    %v188 = vlaneseq
    %v189 = vshrl.u32 %v188, 7
    %v190 = vsub.s32 1, %v189
    %v191 = vrot.slane %v182, %v190
    %vm194 = vcmask 523264
    %v196 = vsel %vm194, %v164, 0
    %v199 = vsel %vm194, %v165, 0
    %201 = vmatprep.subr.mxu0 %v167
    %202 = vmatpush1.msra.mxu0 %v166
    %203 = vmatprep.subr.mxu0 %v169
    %204 = vmatpush1.msra.mxu0 %v168
    %205 = vmatprep.subr.mxu0 %v171
    %206 = vmatpush1.msra.mxu0 %v170
    %207 = vmatprep.subr.mxu0 %v173
    %208 = vmatpush1.msra.mxu0 %v172
    %209 = vmatprep.subr.mxu0 %v175
    %210 = vmatpush1.msra.mxu0 %v174
    %211 = vmatprep.subr.mxu0 %v177
    %212 = vmatpush1.msra.mxu0 %v176
    %213 = vmatprep.subr.mxu0 %v179
    %214 = vmatpush1.msra.mxu0 %v178
    %215 = vmatprep.subr.mxu0 %v181
    %216 = vmatpush1.msra.mxu0 %v180
    %217 = vmatprep.subr.mxu0 0.0
    %218 = vmatpush1.msra.mxu0 0.0
    %219 = vmatprep.subr.mxu0 0.0
    %220 = vmatpush1.msra.mxu0 0.0
    %221 = vmatprep.subr.mxu0 0.0
    %222 = vmatpush1.msra.mxu0 0.0
    %223 = vmatprep.subr.mxu0 0.0
    %224 = vmatpush1.msra.mxu0 0.0
    %225 = vmatprep.subr.mxu0 0.0
    %226 = vmatpush1.msra.mxu0 0.0
    %227 = vmatprep.subr.mxu0 0.0
    %228 = vmatpush1.msra.mxu0 0.0
    %229 = vmatprep.subr.mxu0 0.0
    %230 = vmatpush1.msra.mxu0 0.0
    %231 = vmatprep.subr.mxu0 0.0
    %232 = vmatpush1.msra.mxu0 0.0
    %233 = vmatprep.subr.mxu0 0.0
    %234 = vmatpush1.msra.mxu0 0.0
    %235 = vmatprep.subr.mxu0 0.0
    %236 = vmatpush1.msra.mxu0 0.0
    %237 = vmatprep.subr.mxu0 0.0
    %238 = vmatpush1.msra.mxu0 0.0
    %239 = vmatprep.subr.mxu0 0.0
    %240 = vmatpush1.msra.mxu0 0.0
    %241 = vmatprep.subr.mxu0 0.0
    %242 = vmatpush1.msra.mxu0 0.0
    %243 = vmatprep.subr.mxu0 0.0
    %244 = vmatpush1.msra.mxu0 0.0
    %245 = vmatprep.subr.mxu0 0.0
    %246 = vmatpush1.msra.mxu0 0.0
    %247 = vmatprep.subr.mxu0 0.0
    %248 = vmatpush1.msra.mxu0 0.0
    %249 = vmatprep.subr.mxu0 0.0
    %250 = vmatpush1.msra.mxu0 0.0
    %251 = vmatprep.subr.mxu0 0.0
    %252 = vmatpush1.msra.mxu0 0.0
    %253 = vmatprep.subr.mxu0 0.0
    %254 = vmatpush1.msra.mxu0 0.0
    %255 = vmatprep.subr.mxu0 0.0
    %256 = vmatpush1.msra.mxu0 0.0
    %257 = vmatprep.subr.mxu0 0.0
    %258 = vmatpush1.msra.mxu0 0.0
    %259 = vmatprep.subr.mxu0 0.0
    %260 = vmatpush1.msra.mxu0 0.0
    %261 = vmatprep.subr.mxu0 0.0
    %262 = vmatpush1.msra.mxu0 0.0
    %263 = vmatprep.subr.mxu0 0.0
    %264 = vmatpush1.msra.mxu0 0.0
    %265 = vmatprep.mubr.f32.mxu0 0.0
    %266 = vmatmul.mubr.f32.gmra.mrb[0].mxu0 %v196
    %v267 = vpop.f32.mrb[0].mxu0
    %v268 = vadd.f32 %v187, %v267
    %v269 = vpop.f32.mrb[0].mxu0
    %v270 = vadd.f32 %v191, %v269
    %271 = vmatprep.mubr.f32.mxu0 0.0
    %272 = vmatmul.mubr.f32.gmra.mrb[0].mxu0 %v199
    %v273 = vpop.f32.mrb[0].mxu0
    %v274 = vadd.f32 %v187, %v273
    %v275 = vpop.f32.mrb[0].mxu0
    %v276 = vadd.f32 %v191, %v275
    %277 = vdwg.mxu0
    %v278 = vld [vmem:[#allocation6] sm:$0xff]
    %v279 = vld [vmem:[#allocation6 + $0x8] sm:$0xff]
    %v280 = vld [vmem:[#allocation6 + $0x10] sm:$0xff]
    %v281 = vld [vmem:[#allocation6 + $0x18] sm:$0xff]
    %v282 = vld [vmem:[#allocation6 + $0x20] sm:$0xff]
    %v283 = vld [vmem:[#allocation6 + $0x28] sm:$0xff]
    %v284 = vld [vmem:[#allocation6 + $0x30] sm:$0xff]
    %v285 = vld [vmem:[#allocation6 + $0x38] sm:$0xff]
    %v286 = vld [vmem:[#allocation6 + $0x40] sm:$0xff]
    %v287 = vld [vmem:[#allocation6 + $0x48] sm:$0xff]
    %v288 = vld [vmem:[#allocation6 + $0x50] sm:$0xff]
    %v289 = vld [vmem:[#allocation6 + $0x58] sm:$0xff]
    %v290 = vld [vmem:[#allocation6 + $0x60] sm:$0xff]
    %v291 = vld [vmem:[#allocation6 + $0x68] sm:$0xff]
    %v292 = vld [vmem:[#allocation6 + $0x70] sm:$0xff]
    %v293 = vld [vmem:[#allocation6 + $0x78] sm:$0xff]
    %v294 = vld [vmem:[%s1] sm:$0x3]
    %v295 = vld [vmem:[%s2] sm:$0x3]
    %v297 = vsel %vm194, %v294, 0
    %299 = vmatprep.subr.mxu0 %v279
    %300 = vmatpush1.msra.mxu0 %v278
    %301 = vmatprep.subr.mxu0 %v281
    %302 = vmatpush1.msra.mxu0 %v280
    %303 = vmatprep.subr.mxu0 %v283
    %304 = vmatpush1.msra.mxu0 %v282
    %305 = vmatprep.subr.mxu0 %v285
    %306 = vmatpush1.msra.mxu0 %v284
    %307 = vmatprep.subr.mxu0 %v287
    %308 = vmatpush1.msra.mxu0 %v286
    %309 = vmatprep.subr.mxu0 %v289
    %310 = vmatpush1.msra.mxu0 %v288
    %311 = vmatprep.subr.mxu0 %v291
    %312 = vmatpush1.msra.mxu0 %v290
    %313 = vmatprep.subr.mxu0 %v293
    %314 = vmatpush1.msra.mxu0 %v292
    %315 = vmatprep.subr.mxu0 0.0
    %316 = vmatpush1.msra.mxu0 0.0
    %317 = vmatprep.subr.mxu0 0.0
    %318 = vmatpush1.msra.mxu0 0.0
    %319 = vmatprep.subr.mxu0 0.0
    %320 = vmatpush1.msra.mxu0 0.0
    %321 = vmatprep.subr.mxu0 0.0
    %322 = vmatpush1.msra.mxu0 0.0
    %323 = vmatprep.subr.mxu0 0.0
    %324 = vmatpush1.msra.mxu0 0.0
    %325 = vmatprep.subr.mxu0 0.0
    %326 = vmatpush1.msra.mxu0 0.0
    %327 = vmatprep.subr.mxu0 0.0
    %328 = vmatpush1.msra.mxu0 0.0
    %329 = vmatprep.subr.mxu0 0.0
    %330 = vmatpush1.msra.mxu0 0.0
    %331 = vmatprep.subr.mxu0 0.0
    %332 = vmatpush1.msra.mxu0 0.0
    %333 = vmatprep.subr.mxu0 0.0
    %334 = vmatpush1.msra.mxu0 0.0
    %335 = vmatprep.subr.mxu0 0.0
    %336 = vmatpush1.msra.mxu0 0.0
    %337 = vmatprep.subr.mxu0 0.0
    %338 = vmatpush1.msra.mxu0 0.0
    %339 = vmatprep.subr.mxu0 0.0
    %340 = vmatpush1.msra.mxu0 0.0
    %341 = vmatprep.subr.mxu0 0.0
    %342 = vmatpush1.msra.mxu0 0.0
    %343 = vmatprep.subr.mxu0 0.0
    %344 = vmatpush1.msra.mxu0 0.0
    %345 = vmatprep.subr.mxu0 0.0
    %346 = vmatpush1.msra.mxu0 0.0
    %347 = vmatprep.subr.mxu0 0.0
    %348 = vmatpush1.msra.mxu0 0.0
    %349 = vmatprep.subr.mxu0 0.0
    %350 = vmatpush1.msra.mxu0 0.0
    %351 = vmatprep.subr.mxu0 0.0
    %352 = vmatpush1.msra.mxu0 0.0
    %353 = vmatprep.subr.mxu0 0.0
    %354 = vmatpush1.msra.mxu0 0.0
    %355 = vmatprep.subr.mxu0 0.0
    %356 = vmatpush1.msra.mxu0 0.0
    %357 = vmatprep.subr.mxu0 0.0
    %358 = vmatpush1.msra.mxu0 0.0
    %359 = vmatprep.subr.mxu0 0.0
    %360 = vmatpush1.msra.mxu0 0.0
    %361 = vmatprep.subr.mxu0 0.0
    %362 = vmatpush1.msra.mxu0 0.0
    %363 = vmatprep.mubr.f32.mxu0 0.0
    %364 = vmatmul.mubr.f32.gmra.mrb[0].mxu0 %v297
    %v365 = vpop.f32.mrb[0].mxu0
    %v366 = vadd.f32 0.0, %v365
    %v367 = vpop.f32.mrb[0].mxu0
    %v368 = vadd.f32 0.0, %v367
    %369 = vdwg.mxu0
    %v372 = vrot.slane %v366, 1
    %v373 = vrot.slane %v368, 1
    %v378 = vadd.f32 %v268, %v366
    %v379 = vadd.f32 %v270, %v368
    %v380 = vadd.f32 %v274, %v372
    %v381 = vadd.f32 %v276, %v373
    %v382 = vxor.u32 %v378, 2147483648
    %v383 = vxor.u32 %v380, 2147483648
    %v384 = vmul.f32 %v382, 1.442695
    %v385 = vpow.pop %v384
    %v386 = vmul.f32 %v383, 1.442695
    %v387 = vpow.pop %v386
    %v388 = vadd.f32 %v385, 1.0
    %v389 = vadd.f32 %v387, 1.0
    %v390 = vrcp.pop %v388
    %v391 = vmul.f32 1.0, %v390
    %v392 = vrcp.pop %v389
    %v393 = vmul.f32 1.0, %v392
    %v394 = vtanh.pop %v379
    %v395 = vtanh.pop %v381
    %v396 = vxor.u32 %v379, 2147483648
    %v397 = vxor.u32 %v381, 2147483648
    %v398 = vmul.f32 %v396, 1.442695
    %v399 = vpow.pop %v398
    %v400 = vmul.f32 %v397, 1.442695
    %v401 = vpow.pop %v400
    %v402 = vadd.f32 %v399, 1.0
    %v403 = vadd.f32 %v401, 1.0
    %v404 = vrcp.pop %v402
    %v405 = vmul.f32 1.0, %v404
    %v406 = vrcp.pop %v403
    %v407 = vmul.f32 1.0, %v406
    %v409 = vrot.slane %v295, 1
    %410 = vrot.lane.b32.xlu0 %v295, 64
    %v411 = vpop.permute.xlu0 %410
    %412 = vrot.lane.b32.xlu0 %v409, 64
    %v413 = vpop.permute.xlu0 %412
    %v416 = vmul.f32 %v391, %v411
    %v417 = vmul.f32 %v393, %v413
    %v418 = vmul.f32 %v391, %v394
    %v419 = vmul.f32 %v393, %v395
    %422 = vrot.lane.b32.xlu0 %v418, 64
    %v423 = vpop.permute.xlu0 %422
    %424 = vrot.lane.b32.xlu0 %v419, 64
    %v425 = vpop.permute.xlu0 %424
    %v428 = vadd.f32 %v416, %v423
    %v429 = vadd.f32 %v417, %v425
    %v430 = vtanh.pop %v428
    %v431 = vtanh.pop %v429
    %v432 = vmul.f32 %v405, %v430
    %v433 = vmul.f32 %v407, %v431
    %435 = vrot.lane.b32.xlu0 %v432, 64
    %v436 = vpop.permute.xlu0 %435
    %vm438 = vcmask 516096
    %439 = vst.msk [vmem:[#allocation2] sm:$0x1] %vm438, %v436
    %441 = vrot.lane.b32.xlu0 %v433, 64
    %v442 = vpop.permute.xlu0 %441
    %444 = vst.msk [vmem:[#allocation2 + $0x8] sm:$0x1] %vm438, %v442
    %v445 = vrot.slane %v433, 7
    %vm446 = vcmask 1041409
    %v447 = vsel %vm446, %v445, %v432
    %448 = vrot.lane.b32.xlu0 %v447, 64
    %v449 = vpop.permute.xlu0 %448
    %v450 = vsel %vm194, %v449, 0
    %452 = vmatprep.subr.mxu0 %v279
    %453 = vmatpush1.msra.mxu0 %v278
    %454 = vmatprep.subr.mxu0 %v281
    %455 = vmatpush1.msra.mxu0 %v280
    %456 = vmatprep.subr.mxu0 %v283
    %457 = vmatpush1.msra.mxu0 %v282
    %458 = vmatprep.subr.mxu0 %v285
    %459 = vmatpush1.msra.mxu0 %v284
    %460 = vmatprep.subr.mxu0 %v287
    %461 = vmatpush1.msra.mxu0 %v286
    %462 = vmatprep.subr.mxu0 %v289
    %463 = vmatpush1.msra.mxu0 %v288
    %464 = vmatprep.subr.mxu0 %v291
    %465 = vmatpush1.msra.mxu0 %v290
    %466 = vmatprep.subr.mxu0 %v293
    %467 = vmatpush1.msra.mxu0 %v292
    %468 = vmatprep.subr.mxu0 0.0
    %469 = vmatpush1.msra.mxu0 0.0
    %470 = vmatprep.subr.mxu0 0.0
    %471 = vmatpush1.msra.mxu0 0.0
    %472 = vmatprep.subr.mxu0 0.0
    %473 = vmatpush1.msra.mxu0 0.0
    %474 = vmatprep.subr.mxu0 0.0
    %475 = vmatpush1.msra.mxu0 0.0
    %476 = vmatprep.subr.mxu0 0.0
    %477 = vmatpush1.msra.mxu0 0.0
    %478 = vmatprep.subr.mxu0 0.0
    %479 = vmatpush1.msra.mxu0 0.0
    %480 = vmatprep.subr.mxu0 0.0
    %481 = vmatpush1.msra.mxu0 0.0
    %482 = vmatprep.subr.mxu0 0.0
    %483 = vmatpush1.msra.mxu0 0.0
    %484 = vmatprep.subr.mxu0 0.0
    %485 = vmatpush1.msra.mxu0 0.0
    %486 = vmatprep.subr.mxu0 0.0
    %487 = vmatpush1.msra.mxu0 0.0
    %488 = vmatprep.subr.mxu0 0.0
    %489 = vmatpush1.msra.mxu0 0.0
    %490 = vmatprep.subr.mxu0 0.0
    %491 = vmatpush1.msra.mxu0 0.0
    %492 = vmatprep.subr.mxu0 0.0
    %493 = vmatpush1.msra.mxu0 0.0
    %494 = vmatprep.subr.mxu0 0.0
    %495 = vmatpush1.msra.mxu0 0.0
    %496 = vmatprep.subr.mxu0 0.0
    %497 = vmatpush1.msra.mxu0 0.0
    %498 = vmatprep.subr.mxu0 0.0
    %499 = vmatpush1.msra.mxu0 0.0
    %500 = vmatprep.subr.mxu0 0.0
    %501 = vmatpush1.msra.mxu0 0.0
    %502 = vmatprep.subr.mxu0 0.0
    %503 = vmatpush1.msra.mxu0 0.0
    %504 = vmatprep.subr.mxu0 0.0
    %505 = vmatpush1.msra.mxu0 0.0
    %506 = vmatprep.subr.mxu0 0.0
    %507 = vmatpush1.msra.mxu0 0.0
    %508 = vmatprep.subr.mxu0 0.0
    %509 = vmatpush1.msra.mxu0 0.0
    %510 = vmatprep.subr.mxu0 0.0
    %511 = vmatpush1.msra.mxu0 0.0
    %512 = vmatprep.subr.mxu0 0.0
    %513 = vmatpush1.msra.mxu0 0.0
    %514 = vmatprep.subr.mxu0 0.0
    %515 = vmatpush1.msra.mxu0 0.0
    %516 = vmatprep.mubr.f32.mxu0 0.0
    %517 = vmatmul.mubr.f32.gmra.mrb[0].mxu0 %v450
    %v518 = vpop.f32.mrb[0].mxu0
    %v519 = vadd.f32 0.0, %v518
    %v520 = vpop.f32.mrb[0].mxu0
    %v521 = vadd.f32 0.0, %v520
    %522 = vdwg.mxu0
    %v525 = vrot.slane %v519, 7
    %v526 = vrot.slane %v521, 7
    %v531 = vadd.f32 %v268, %v525
    %v532 = vadd.f32 %v270, %v526
    %v533 = vadd.f32 %v274, %v519
    %v534 = vadd.f32 %v276, %v521
    %v535 = vxor.u32 %v531, 2147483648
    %v536 = vxor.u32 %v533, 2147483648
    %v537 = vmul.f32 %v535, 1.442695
    %v538 = vpow.pop %v537
    %v539 = vmul.f32 %v536, 1.442695
    %v540 = vpow.pop %v539
    %v541 = vadd.f32 %v538, 1.0
    %v542 = vadd.f32 %v540, 1.0
    %v543 = vrcp.pop %v541
    %v544 = vmul.f32 1.0, %v543
    %v545 = vrcp.pop %v542
    %v546 = vmul.f32 1.0, %v545
    %v547 = vtanh.pop %v532
    %v548 = vtanh.pop %v534
    %v549 = vxor.u32 %v532, 2147483648
    %v550 = vxor.u32 %v534, 2147483648
    %v551 = vmul.f32 %v549, 1.442695
    %v552 = vpow.pop %v551
    %v553 = vmul.f32 %v550, 1.442695
    %v554 = vpow.pop %v553
    %v555 = vadd.f32 %v552, 1.0
    %v556 = vadd.f32 %v554, 1.0
    %v557 = vrcp.pop %v555
    %v558 = vmul.f32 1.0, %v557
    %v559 = vrcp.pop %v556
    %v560 = vmul.f32 1.0, %v559
    %v563 = vrot.slane %v428, 7
    %v564 = vrot.slane %v429, 7
    %v567 = vmul.f32 %v544, %v563
    %v568 = vmul.f32 %v546, %v564
    %v569 = vmul.f32 %v544, %v547
    %v570 = vmul.f32 %v546, %v548
    %573 = vrot.lane.b32.xlu0 %v569, 64
    %v574 = vpop.permute.xlu0 %573
    %575 = vrot.lane.b32.xlu0 %v570, 64
    %v576 = vpop.permute.xlu0 %575
    %v579 = vadd.f32 %v567, %v574
    %v580 = vadd.f32 %v568, %v576
    %v581 = vtanh.pop %v579
    %v582 = vtanh.pop %v580
    %v583 = vmul.f32 %v558, %v581
    %v584 = vmul.f32 %v560, %v582
    %586 = vrot.lane.b32.xlu0 %v583, 64
    %v587 = vpop.permute.xlu0 %586
    %vm589 = vcmask 517121
    %590 = vst.msk [vmem:[#allocation2] sm:$0x2] %vm589, %v587
    %592 = vrot.lane.b32.xlu0 %v584, 64
    %v593 = vpop.permute.xlu0 %592
    %595 = vst.msk [vmem:[#allocation2 + $0x8] sm:$0x2] %vm589, %v593
    %v596 = vrot.slane %v583, 1
    %v597 = vsel %vm446, %v584, %v596
    %598 = vrot.lane.b32.xlu0 %v597, 64
    %v599 = vpop.permute.xlu0 %598
    %v600 = vsel %vm194, %v599, 0
    %602 = vmatprep.subr.mxu0 %v279
    %603 = vmatpush1.msra.mxu0 %v278
    %604 = vmatprep.subr.mxu0 %v281
    %605 = vmatpush1.msra.mxu0 %v280
    %606 = vmatprep.subr.mxu0 %v283
    %607 = vmatpush1.msra.mxu0 %v282
    %608 = vmatprep.subr.mxu0 %v285
    %609 = vmatpush1.msra.mxu0 %v284
    %610 = vmatprep.subr.mxu0 %v287
    %611 = vmatpush1.msra.mxu0 %v286
    %612 = vmatprep.subr.mxu0 %v289
    %613 = vmatpush1.msra.mxu0 %v288
    %614 = vmatprep.subr.mxu0 %v291
    %615 = vmatpush1.msra.mxu0 %v290
    %616 = vmatprep.subr.mxu0 %v293
    %617 = vmatpush1.msra.mxu0 %v292
    %618 = vmatprep.subr.mxu0 0.0
    %619 = vmatpush1.msra.mxu0 0.0
    %620 = vmatprep.subr.mxu0 0.0
    %621 = vmatpush1.msra.mxu0 0.0
    %622 = vmatprep.subr.mxu0 0.0
    %623 = vmatpush1.msra.mxu0 0.0
    %624 = vmatprep.subr.mxu0 0.0
    %625 = vmatpush1.msra.mxu0 0.0
    %626 = vmatprep.subr.mxu0 0.0
    %627 = vmatpush1.msra.mxu0 0.0
    %628 = vmatprep.subr.mxu0 0.0
    %629 = vmatpush1.msra.mxu0 0.0
    %630 = vmatprep.subr.mxu0 0.0
    %631 = vmatpush1.msra.mxu0 0.0
    %632 = vmatprep.subr.mxu0 0.0
    %633 = vmatpush1.msra.mxu0 0.0
    %634 = vmatprep.subr.mxu0 0.0
    %635 = vmatpush1.msra.mxu0 0.0
    %636 = vmatprep.subr.mxu0 0.0
    %637 = vmatpush1.msra.mxu0 0.0
    %638 = vmatprep.subr.mxu0 0.0
    %639 = vmatpush1.msra.mxu0 0.0
    %640 = vmatprep.subr.mxu0 0.0
    %641 = vmatpush1.msra.mxu0 0.0
    %642 = vmatprep.subr.mxu0 0.0
    %643 = vmatpush1.msra.mxu0 0.0
    %644 = vmatprep.subr.mxu0 0.0
    %645 = vmatpush1.msra.mxu0 0.0
    %646 = vmatprep.subr.mxu0 0.0
    %647 = vmatpush1.msra.mxu0 0.0
    %648 = vmatprep.subr.mxu0 0.0
    %649 = vmatpush1.msra.mxu0 0.0
    %650 = vmatprep.subr.mxu0 0.0
    %651 = vmatpush1.msra.mxu0 0.0
    %652 = vmatprep.subr.mxu0 0.0
    %653 = vmatpush1.msra.mxu0 0.0
    %654 = vmatprep.subr.mxu0 0.0
    %655 = vmatpush1.msra.mxu0 0.0
    %656 = vmatprep.subr.mxu0 0.0
    %657 = vmatpush1.msra.mxu0 0.0
    %658 = vmatprep.subr.mxu0 0.0
    %659 = vmatpush1.msra.mxu0 0.0
    %660 = vmatprep.subr.mxu0 0.0
    %661 = vmatpush1.msra.mxu0 0.0
    %662 = vmatprep.subr.mxu0 0.0
    %663 = vmatpush1.msra.mxu0 0.0
    %664 = vmatprep.subr.mxu0 0.0
    %665 = vmatpush1.msra.mxu0 0.0
    %666 = vmatprep.mubr.f32.mxu0 0.0
    %667 = vmatmul.mubr.f32.gmra.mrb[0].mxu0 %v600
    %v668 = vpop.f32.mrb[0].mxu0
    %v669 = vadd.f32 0.0, %v668
    %v670 = vpop.f32.mrb[0].mxu0
    %v671 = vadd.f32 0.0, %v670
    %672 = vdwg.mxu0
    %v675 = vrot.slane %v669, 6
    %v676 = vrot.slane %v671, 6
    %v677 = vrot.slane %v669, 7
    %v678 = vrot.slane %v671, 7
    %v683 = vadd.f32 %v268, %v675
    %v684 = vadd.f32 %v270, %v676
    %v685 = vadd.f32 %v274, %v677
    %v686 = vadd.f32 %v276, %v678
    %v687 = vxor.u32 %v683, 2147483648
    %v688 = vxor.u32 %v685, 2147483648
    %v689 = vmul.f32 %v687, 1.442695
    %v690 = vpow.pop %v689
    %v691 = vmul.f32 %v688, 1.442695
    %v692 = vpow.pop %v691
    %v693 = vadd.f32 %v690, 1.0
    %v694 = vadd.f32 %v692, 1.0
    %v695 = vrcp.pop %v693
    %v696 = vmul.f32 1.0, %v695
    %v697 = vrcp.pop %v694
    %v698 = vmul.f32 1.0, %v697
    %v699 = vtanh.pop %v684
    %v700 = vtanh.pop %v686
    %v701 = vxor.u32 %v684, 2147483648
    %v702 = vxor.u32 %v686, 2147483648
    %v703 = vmul.f32 %v701, 1.442695
    %v704 = vpow.pop %v703
    %v705 = vmul.f32 %v702, 1.442695
    %v706 = vpow.pop %v705
    %v707 = vadd.f32 %v704, 1.0
    %v708 = vadd.f32 %v706, 1.0
    %v709 = vrcp.pop %v707
    %v710 = vmul.f32 1.0, %v709
    %v711 = vrcp.pop %v708
    %v712 = vmul.f32 1.0, %v711
    %v715 = vrot.slane %v579, 7
    %v716 = vrot.slane %v580, 7
    %v719 = vmul.f32 %v696, %v715
    %v720 = vmul.f32 %v698, %v716
    %v721 = vmul.f32 %v696, %v699
    %v722 = vmul.f32 %v698, %v700
    %725 = vrot.lane.b32.xlu0 %v721, 64
    %v726 = vpop.permute.xlu0 %725
    %727 = vrot.lane.b32.xlu0 %v722, 64
    %v728 = vpop.permute.xlu0 %727
    %v731 = vadd.f32 %v719, %v726
    %v732 = vadd.f32 %v720, %v728
    %v733 = vtanh.pop %v731
    %v734 = vtanh.pop %v732
    %v735 = vmul.f32 %v710, %v733
    %v736 = vmul.f32 %v712, %v734
    %738 = vrot.lane.b32.xlu0 %v735, 64
    %v739 = vpop.permute.xlu0 %738
    %vm741 = vcmask 518146
    %742 = vst.msk [vmem:[#allocation2] sm:$0x4] %vm741, %v739
    %744 = vrot.lane.b32.xlu0 %v736, 64
    %v745 = vpop.permute.xlu0 %744
    %747 = vst.msk [vmem:[#allocation2 + $0x8] sm:$0x4] %vm741, %v745
    %v748 = vrot.slane %v735, 2
    %v749 = vrot.slane %v736, 1
    %v750 = vsel %vm446, %v749, %v748
    %751 = vrot.lane.b32.xlu0 %v750, 64
    %v752 = vpop.permute.xlu0 %751
    %v753 = vsel %vm194, %v752, 0
    %755 = vmatprep.subr.mxu0 %v279
    %756 = vmatpush1.msra.mxu0 %v278
    %757 = vmatprep.subr.mxu0 %v281
    %758 = vmatpush1.msra.mxu0 %v280
    %759 = vmatprep.subr.mxu0 %v283
    %760 = vmatpush1.msra.mxu0 %v282
    %761 = vmatprep.subr.mxu0 %v285
    %762 = vmatpush1.msra.mxu0 %v284
    %763 = vmatprep.subr.mxu0 %v287
    %764 = vmatpush1.msra.mxu0 %v286
    %765 = vmatprep.subr.mxu0 %v289
    %766 = vmatpush1.msra.mxu0 %v288
    %767 = vmatprep.subr.mxu0 %v291
    %768 = vmatpush1.msra.mxu0 %v290
    %769 = vmatprep.subr.mxu0 %v293
    %770 = vmatpush1.msra.mxu0 %v292
    %771 = vmatprep.subr.mxu0 0.0
    %772 = vmatpush1.msra.mxu0 0.0
    %773 = vmatprep.subr.mxu0 0.0
    %774 = vmatpush1.msra.mxu0 0.0
    %775 = vmatprep.subr.mxu0 0.0
    %776 = vmatpush1.msra.mxu0 0.0
    %777 = vmatprep.subr.mxu0 0.0
    %778 = vmatpush1.msra.mxu0 0.0
    %779 = vmatprep.subr.mxu0 0.0
    %780 = vmatpush1.msra.mxu0 0.0
    %781 = vmatprep.subr.mxu0 0.0
    %782 = vmatpush1.msra.mxu0 0.0
    %783 = vmatprep.subr.mxu0 0.0
    %784 = vmatpush1.msra.mxu0 0.0
    %785 = vmatprep.subr.mxu0 0.0
    %786 = vmatpush1.msra.mxu0 0.0
    %787 = vmatprep.subr.mxu0 0.0
    %788 = vmatpush1.msra.mxu0 0.0
    %789 = vmatprep.subr.mxu0 0.0
    %790 = vmatpush1.msra.mxu0 0.0
    %791 = vmatprep.subr.mxu0 0.0
    %792 = vmatpush1.msra.mxu0 0.0
    %793 = vmatprep.subr.mxu0 0.0
    %794 = vmatpush1.msra.mxu0 0.0
    %795 = vmatprep.subr.mxu0 0.0
    %796 = vmatpush1.msra.mxu0 0.0
    %797 = vmatprep.subr.mxu0 0.0
    %798 = vmatpush1.msra.mxu0 0.0
    %799 = vmatprep.subr.mxu0 0.0
    %800 = vmatpush1.msra.mxu0 0.0
    %801 = vmatprep.subr.mxu0 0.0
    %802 = vmatpush1.msra.mxu0 0.0
    %803 = vmatprep.subr.mxu0 0.0
    %804 = vmatpush1.msra.mxu0 0.0
    %805 = vmatprep.subr.mxu0 0.0
    %806 = vmatpush1.msra.mxu0 0.0
    %807 = vmatprep.subr.mxu0 0.0
    %808 = vmatpush1.msra.mxu0 0.0
    %809 = vmatprep.subr.mxu0 0.0
    %810 = vmatpush1.msra.mxu0 0.0
    %811 = vmatprep.subr.mxu0 0.0
    %812 = vmatpush1.msra.mxu0 0.0
    %813 = vmatprep.subr.mxu0 0.0
    %814 = vmatpush1.msra.mxu0 0.0
    %815 = vmatprep.subr.mxu0 0.0
    %816 = vmatpush1.msra.mxu0 0.0
    %817 = vmatprep.subr.mxu0 0.0
    %818 = vmatpush1.msra.mxu0 0.0
    %819 = vmatprep.mubr.f32.mxu0 0.0
    %820 = vmatmul.mubr.f32.gmra.mrb[0].mxu0 %v753
    %v821 = vpop.f32.mrb[0].mxu0
    %v822 = vadd.f32 0.0, %v821
    %v823 = vpop.f32.mrb[0].mxu0
    %v824 = vadd.f32 0.0, %v823
    %825 = vdwg.mxu0
    %v828 = vrot.slane %v822, 5
    %v829 = vrot.slane %v824, 5
    %v830 = vrot.slane %v822, 6
    %v831 = vrot.slane %v824, 6
    %v836 = vadd.f32 %v268, %v828
    %v837 = vadd.f32 %v270, %v829
    %v838 = vadd.f32 %v274, %v830
    %v839 = vadd.f32 %v276, %v831
    %v840 = vxor.u32 %v836, 2147483648
    %v841 = vxor.u32 %v838, 2147483648
    %v842 = vmul.f32 %v840, 1.442695
    %v843 = vpow.pop %v842
    %v844 = vmul.f32 %v841, 1.442695
    %v845 = vpow.pop %v844
    %v846 = vadd.f32 %v843, 1.0
    %v847 = vadd.f32 %v845, 1.0
    %v848 = vrcp.pop %v846
    %v849 = vmul.f32 1.0, %v848
    %v850 = vrcp.pop %v847
    %v851 = vmul.f32 1.0, %v850
    %v852 = vtanh.pop %v837
    %v853 = vtanh.pop %v839
    %v854 = vxor.u32 %v837, 2147483648
    %v855 = vxor.u32 %v839, 2147483648
    %v856 = vmul.f32 %v854, 1.442695
    %v857 = vpow.pop %v856
    %v858 = vmul.f32 %v855, 1.442695
    %v859 = vpow.pop %v858
    %v860 = vadd.f32 %v857, 1.0
    %v861 = vadd.f32 %v859, 1.0
    %v862 = vrcp.pop %v860
    %v863 = vmul.f32 1.0, %v862
    %v864 = vrcp.pop %v861
    %v865 = vmul.f32 1.0, %v864
    %v868 = vrot.slane %v731, 7
    %v869 = vrot.slane %v732, 7
    %v872 = vmul.f32 %v849, %v868
    %v873 = vmul.f32 %v851, %v869
    %v874 = vmul.f32 %v849, %v852
    %v875 = vmul.f32 %v851, %v853
    %878 = vrot.lane.b32.xlu0 %v874, 64
    %v879 = vpop.permute.xlu0 %878
    %880 = vrot.lane.b32.xlu0 %v875, 64
    %v881 = vpop.permute.xlu0 %880
    %v884 = vadd.f32 %v872, %v879
    %v885 = vadd.f32 %v873, %v881
    %v886 = vtanh.pop %v884
    %v887 = vtanh.pop %v885
    %v888 = vmul.f32 %v863, %v886
    %v889 = vmul.f32 %v865, %v887
    %891 = vrot.lane.b32.xlu0 %v888, 64
    %v892 = vpop.permute.xlu0 %891
    %vm894 = vcmask 519171
    %895 = vst.msk [vmem:[#allocation2] sm:$0x8] %vm894, %v892
    %897 = vrot.lane.b32.xlu0 %v889, 64
    %v898 = vpop.permute.xlu0 %897
    %900 = vst.msk [vmem:[#allocation2 + $0x8] sm:$0x8] %vm894, %v898
    %v901 = vrot.slane %v888, 3
    %v902 = vrot.slane %v889, 2
    %v903 = vsel %vm446, %v902, %v901
    %904 = vrot.lane.b32.xlu0 %v903, 64
    %v905 = vpop.permute.xlu0 %904
    %v906 = vsel %vm194, %v905, 0
    %908 = vmatprep.subr.mxu0 %v279
    %909 = vmatpush1.msra.mxu0 %v278
    %910 = vmatprep.subr.mxu0 %v281
    %911 = vmatpush1.msra.mxu0 %v280
    %912 = vmatprep.subr.mxu0 %v283
    %913 = vmatpush1.msra.mxu0 %v282
    %914 = vmatprep.subr.mxu0 %v285
    %915 = vmatpush1.msra.mxu0 %v284
    %916 = vmatprep.subr.mxu0 %v287
    %917 = vmatpush1.msra.mxu0 %v286
    %918 = vmatprep.subr.mxu0 %v289
    %919 = vmatpush1.msra.mxu0 %v288
    %920 = vmatprep.subr.mxu0 %v291
    %921 = vmatpush1.msra.mxu0 %v290
    %922 = vmatprep.subr.mxu0 %v293
    %923 = vmatpush1.msra.mxu0 %v292
    %924 = vmatprep.subr.mxu0 0.0
    %925 = vmatpush1.msra.mxu0 0.0
    %926 = vmatprep.subr.mxu0 0.0
    %927 = vmatpush1.msra.mxu0 0.0
    %928 = vmatprep.subr.mxu0 0.0
    %929 = vmatpush1.msra.mxu0 0.0
    %930 = vmatprep.subr.mxu0 0.0
    %931 = vmatpush1.msra.mxu0 0.0
    %932 = vmatprep.subr.mxu0 0.0
    %933 = vmatpush1.msra.mxu0 0.0
    %934 = vmatprep.subr.mxu0 0.0
    %935 = vmatpush1.msra.mxu0 0.0
    %936 = vmatprep.subr.mxu0 0.0
    %937 = vmatpush1.msra.mxu0 0.0
    %938 = vmatprep.subr.mxu0 0.0
    %939 = vmatpush1.msra.mxu0 0.0
    %940 = vmatprep.subr.mxu0 0.0
    %941 = vmatpush1.msra.mxu0 0.0
    %942 = vmatprep.subr.mxu0 0.0
    %943 = vmatpush1.msra.mxu0 0.0
    %944 = vmatprep.subr.mxu0 0.0
    %945 = vmatpush1.msra.mxu0 0.0
    %946 = vmatprep.subr.mxu0 0.0
    %947 = vmatpush1.msra.mxu0 0.0
    %948 = vmatprep.subr.mxu0 0.0
    %949 = vmatpush1.msra.mxu0 0.0
    %950 = vmatprep.subr.mxu0 0.0
    %951 = vmatpush1.msra.mxu0 0.0
    %952 = vmatprep.subr.mxu0 0.0
    %953 = vmatpush1.msra.mxu0 0.0
    %954 = vmatprep.subr.mxu0 0.0
    %955 = vmatpush1.msra.mxu0 0.0
    %956 = vmatprep.subr.mxu0 0.0
    %957 = vmatpush1.msra.mxu0 0.0
    %958 = vmatprep.subr.mxu0 0.0
    %959 = vmatpush1.msra.mxu0 0.0
    %960 = vmatprep.subr.mxu0 0.0
    %961 = vmatpush1.msra.mxu0 0.0
    %962 = vmatprep.subr.mxu0 0.0
    %963 = vmatpush1.msra.mxu0 0.0
    %964 = vmatprep.subr.mxu0 0.0
    %965 = vmatpush1.msra.mxu0 0.0
    %966 = vmatprep.subr.mxu0 0.0
    %967 = vmatpush1.msra.mxu0 0.0
    %968 = vmatprep.subr.mxu0 0.0
    %969 = vmatpush1.msra.mxu0 0.0
    %970 = vmatprep.subr.mxu0 0.0
    %971 = vmatpush1.msra.mxu0 0.0
    %972 = vmatprep.mubr.f32.mxu0 0.0
    %973 = vmatmul.mubr.f32.gmra.mrb[0].mxu0 %v906
    %v974 = vpop.f32.mrb[0].mxu0
    %v975 = vadd.f32 0.0, %v974
    %v976 = vpop.f32.mrb[0].mxu0
    %v977 = vadd.f32 0.0, %v976
    %978 = vdwg.mxu0
    %v981 = vrot.slane %v975, 4
    %v982 = vrot.slane %v977, 4
    %v983 = vrot.slane %v975, 5
    %v984 = vrot.slane %v977, 5
    %v989 = vadd.f32 %v268, %v981
    %v990 = vadd.f32 %v270, %v982
    %v991 = vadd.f32 %v274, %v983
    %v992 = vadd.f32 %v276, %v984
    %v993 = vxor.u32 %v989, 2147483648
    %v994 = vxor.u32 %v991, 2147483648
    %v995 = vmul.f32 %v993, 1.442695
    %v996 = vpow.pop %v995
    %v997 = vmul.f32 %v994, 1.442695
    %v998 = vpow.pop %v997
    %v999 = vadd.f32 %v996, 1.0
    %v1000 = vadd.f32 %v998, 1.0
    %v1001 = vrcp.pop %v999
    %v1002 = vmul.f32 1.0, %v1001
    %v1003 = vrcp.pop %v1000
    %v1004 = vmul.f32 1.0, %v1003
    %v1005 = vtanh.pop %v990
    %v1006 = vtanh.pop %v992
    %v1007 = vxor.u32 %v990, 2147483648
    %v1008 = vxor.u32 %v992, 2147483648
    %v1009 = vmul.f32 %v1007, 1.442695
    %v1010 = vpow.pop %v1009
    %v1011 = vmul.f32 %v1008, 1.442695
    %v1012 = vpow.pop %v1011
    %v1013 = vadd.f32 %v1010, 1.0
    %v1014 = vadd.f32 %v1012, 1.0
    %v1015 = vrcp.pop %v1013
    %v1016 = vmul.f32 1.0, %v1015
    %v1017 = vrcp.pop %v1014
    %v1018 = vmul.f32 1.0, %v1017
    %v1021 = vrot.slane %v884, 7
    %v1022 = vrot.slane %v885, 7
    %v1025 = vmul.f32 %v1002, %v1021
    %v1026 = vmul.f32 %v1004, %v1022
    %v1027 = vmul.f32 %v1002, %v1005
    %v1028 = vmul.f32 %v1004, %v1006
    %1031 = vrot.lane.b32.xlu0 %v1027, 64
    %v1032 = vpop.permute.xlu0 %1031
    %1033 = vrot.lane.b32.xlu0 %v1028, 64
    %v1034 = vpop.permute.xlu0 %1033
    %v1037 = vadd.f32 %v1025, %v1032
    %v1038 = vadd.f32 %v1026, %v1034
    %v1039 = vtanh.pop %v1037
    %v1040 = vtanh.pop %v1038
    %v1041 = vmul.f32 %v1016, %v1039
    %v1042 = vmul.f32 %v1018, %v1040
    %1044 = vrot.lane.b32.xlu0 %v1041, 64
    %v1045 = vpop.permute.xlu0 %1044
    %vm1047 = vcmask 520196
    %1048 = vst.msk [vmem:[#allocation2] sm:$0x10] %vm1047, %v1045
    %1050 = vrot.lane.b32.xlu0 %v1042, 64
    %v1051 = vpop.permute.xlu0 %1050
    %1053 = vst.msk [vmem:[#allocation2 + $0x8] sm:$0x10] %vm1047, %v1051
    %v1054 = vrot.slane %v1041, 4
    %v1055 = vrot.slane %v1042, 3
    %v1056 = vsel %vm446, %v1055, %v1054
    %1057 = vrot.lane.b32.xlu0 %v1056, 64
    %v1058 = vpop.permute.xlu0 %1057
    %v1059 = vsel %vm194, %v1058, 0
    %1061 = vmatprep.subr.mxu0 %v279
    %1062 = vmatpush1.msra.mxu0 %v278
    %1063 = vmatprep.subr.mxu0 %v281
    %1064 = vmatpush1.msra.mxu0 %v280
    %1065 = vmatprep.subr.mxu0 %v283
    %1066 = vmatpush1.msra.mxu0 %v282
    %1067 = vmatprep.subr.mxu0 %v285
    %1068 = vmatpush1.msra.mxu0 %v284
    %1069 = vmatprep.subr.mxu0 %v287
    %1070 = vmatpush1.msra.mxu0 %v286
    %1071 = vmatprep.subr.mxu0 %v289
    %1072 = vmatpush1.msra.mxu0 %v288
    %1073 = vmatprep.subr.mxu0 %v291
    %1074 = vmatpush1.msra.mxu0 %v290
    %1075 = vmatprep.subr.mxu0 %v293
    %1076 = vmatpush1.msra.mxu0 %v292
    %1077 = vmatprep.subr.mxu0 0.0
    %1078 = vmatpush1.msra.mxu0 0.0
    %1079 = vmatprep.subr.mxu0 0.0
    %1080 = vmatpush1.msra.mxu0 0.0
    %1081 = vmatprep.subr.mxu0 0.0
    %1082 = vmatpush1.msra.mxu0 0.0
    %1083 = vmatprep.subr.mxu0 0.0
    %1084 = vmatpush1.msra.mxu0 0.0
    %1085 = vmatprep.subr.mxu0 0.0
    %1086 = vmatpush1.msra.mxu0 0.0
    %1087 = vmatprep.subr.mxu0 0.0
    %1088 = vmatpush1.msra.mxu0 0.0
    %1089 = vmatprep.subr.mxu0 0.0
    %1090 = vmatpush1.msra.mxu0 0.0
    %1091 = vmatprep.subr.mxu0 0.0
    %1092 = vmatpush1.msra.mxu0 0.0
    %1093 = vmatprep.subr.mxu0 0.0
    %1094 = vmatpush1.msra.mxu0 0.0
    %1095 = vmatprep.subr.mxu0 0.0
    %1096 = vmatpush1.msra.mxu0 0.0
    %1097 = vmatprep.subr.mxu0 0.0
    %1098 = vmatpush1.msra.mxu0 0.0
    %1099 = vmatprep.subr.mxu0 0.0
    %1100 = vmatpush1.msra.mxu0 0.0
    %1101 = vmatprep.subr.mxu0 0.0
    %1102 = vmatpush1.msra.mxu0 0.0
    %1103 = vmatprep.subr.mxu0 0.0
    %1104 = vmatpush1.msra.mxu0 0.0
    %1105 = vmatprep.subr.mxu0 0.0
    %1106 = vmatpush1.msra.mxu0 0.0
    %1107 = vmatprep.subr.mxu0 0.0
    %1108 = vmatpush1.msra.mxu0 0.0
    %1109 = vmatprep.subr.mxu0 0.0
    %1110 = vmatpush1.msra.mxu0 0.0
    %1111 = vmatprep.subr.mxu0 0.0
    %1112 = vmatpush1.msra.mxu0 0.0
    %1113 = vmatprep.subr.mxu0 0.0
    %1114 = vmatpush1.msra.mxu0 0.0
    %1115 = vmatprep.subr.mxu0 0.0
    %1116 = vmatpush1.msra.mxu0 0.0
    %1117 = vmatprep.subr.mxu0 0.0
    %1118 = vmatpush1.msra.mxu0 0.0
    %1119 = vmatprep.subr.mxu0 0.0
    %1120 = vmatpush1.msra.mxu0 0.0
    %1121 = vmatprep.subr.mxu0 0.0
    %1122 = vmatpush1.msra.mxu0 0.0
    %1123 = vmatprep.subr.mxu0 0.0
    %1124 = vmatpush1.msra.mxu0 0.0
    %1125 = vmatprep.mubr.f32.mxu0 0.0
    %1126 = vmatmul.mubr.f32.gmra.mrb[0].mxu0 %v1059
    %v1127 = vpop.f32.mrb[0].mxu0
    %v1128 = vadd.f32 0.0, %v1127
    %v1129 = vpop.f32.mrb[0].mxu0
    %v1130 = vadd.f32 0.0, %v1129
    %1131 = vdwg.mxu0
    %v1134 = vrot.slane %v1128, 3
    %v1135 = vrot.slane %v1130, 3
    %v1136 = vrot.slane %v1128, 4
    %v1137 = vrot.slane %v1130, 4
    %v1142 = vadd.f32 %v268, %v1134
    %v1143 = vadd.f32 %v270, %v1135
    %v1144 = vadd.f32 %v274, %v1136
    %v1145 = vadd.f32 %v276, %v1137
    %v1146 = vxor.u32 %v1142, 2147483648
    %v1147 = vxor.u32 %v1144, 2147483648
    %v1148 = vmul.f32 %v1146, 1.442695
    %v1149 = vpow.pop %v1148
    %v1150 = vmul.f32 %v1147, 1.442695
    %v1151 = vpow.pop %v1150
    %v1152 = vadd.f32 %v1149, 1.0
    %v1153 = vadd.f32 %v1151, 1.0
    %v1154 = vrcp.pop %v1152
    %v1155 = vmul.f32 1.0, %v1154
    %v1156 = vrcp.pop %v1153
    %v1157 = vmul.f32 1.0, %v1156
    %v1158 = vtanh.pop %v1143
    %v1159 = vtanh.pop %v1145
    %v1160 = vxor.u32 %v1143, 2147483648
    %v1161 = vxor.u32 %v1145, 2147483648
    %v1162 = vmul.f32 %v1160, 1.442695
    %v1163 = vpow.pop %v1162
    %v1164 = vmul.f32 %v1161, 1.442695
    %v1165 = vpow.pop %v1164
    %v1166 = vadd.f32 %v1163, 1.0
    %v1167 = vadd.f32 %v1165, 1.0
    %v1168 = vrcp.pop %v1166
    %v1169 = vmul.f32 1.0, %v1168
    %v1170 = vrcp.pop %v1167
    %v1171 = vmul.f32 1.0, %v1170
    %v1174 = vrot.slane %v1037, 7
    %v1175 = vrot.slane %v1038, 7
    %v1178 = vmul.f32 %v1155, %v1174
    %v1179 = vmul.f32 %v1157, %v1175
    %v1180 = vmul.f32 %v1155, %v1158
    %v1181 = vmul.f32 %v1157, %v1159
    %1184 = vrot.lane.b32.xlu0 %v1180, 64
    %v1185 = vpop.permute.xlu0 %1184
    %1186 = vrot.lane.b32.xlu0 %v1181, 64
    %v1187 = vpop.permute.xlu0 %1186
    %v1190 = vadd.f32 %v1178, %v1185
    %v1191 = vadd.f32 %v1179, %v1187
    %v1192 = vtanh.pop %v1190
    %v1193 = vtanh.pop %v1191
    %v1194 = vmul.f32 %v1169, %v1192
    %v1195 = vmul.f32 %v1171, %v1193
    %1197 = vrot.lane.b32.xlu0 %v1194, 64
    %v1198 = vpop.permute.xlu0 %1197
    %vm1200 = vcmask 521221
    %1201 = vst.msk [vmem:[#allocation2] sm:$0x20] %vm1200, %v1198
    %1203 = vrot.lane.b32.xlu0 %v1195, 64
    %v1204 = vpop.permute.xlu0 %1203
    %1206 = vst.msk [vmem:[#allocation2 + $0x8] sm:$0x20] %vm1200, %v1204
    %v1207 = vrot.slane %v1194, 5
    %v1208 = vrot.slane %v1195, 4
    %v1209 = vsel %vm446, %v1208, %v1207
    %1210 = vrot.lane.b32.xlu0 %v1209, 64
    %v1211 = vpop.permute.xlu0 %1210
    %v1212 = vsel %vm194, %v1211, 0
    %1214 = vmatprep.subr.mxu0 %v279
    %1215 = vmatpush1.msra.mxu0 %v278
    %1216 = vmatprep.subr.mxu0 %v281
    %1217 = vmatpush1.msra.mxu0 %v280
    %1218 = vmatprep.subr.mxu0 %v283
    %1219 = vmatpush1.msra.mxu0 %v282
    %1220 = vmatprep.subr.mxu0 %v285
    %1221 = vmatpush1.msra.mxu0 %v284
    %1222 = vmatprep.subr.mxu0 %v287
    %1223 = vmatpush1.msra.mxu0 %v286
    %1224 = vmatprep.subr.mxu0 %v289
    %1225 = vmatpush1.msra.mxu0 %v288
    %1226 = vmatprep.subr.mxu0 %v291
    %1227 = vmatpush1.msra.mxu0 %v290
    %1228 = vmatprep.subr.mxu0 %v293
    %1229 = vmatpush1.msra.mxu0 %v292
    %1230 = vmatprep.subr.mxu0 0.0
    %1231 = vmatpush1.msra.mxu0 0.0
    %1232 = vmatprep.subr.mxu0 0.0
    %1233 = vmatpush1.msra.mxu0 0.0
    %1234 = vmatprep.subr.mxu0 0.0
    %1235 = vmatpush1.msra.mxu0 0.0
    %1236 = vmatprep.subr.mxu0 0.0
    %1237 = vmatpush1.msra.mxu0 0.0
    %1238 = vmatprep.subr.mxu0 0.0
    %1239 = vmatpush1.msra.mxu0 0.0
    %1240 = vmatprep.subr.mxu0 0.0
    %1241 = vmatpush1.msra.mxu0 0.0
    %1242 = vmatprep.subr.mxu0 0.0
    %1243 = vmatpush1.msra.mxu0 0.0
    %1244 = vmatprep.subr.mxu0 0.0
    %1245 = vmatpush1.msra.mxu0 0.0
    %1246 = vmatprep.subr.mxu0 0.0
    %1247 = vmatpush1.msra.mxu0 0.0
    %1248 = vmatprep.subr.mxu0 0.0
    %1249 = vmatpush1.msra.mxu0 0.0
    %1250 = vmatprep.subr.mxu0 0.0
    %1251 = vmatpush1.msra.mxu0 0.0
    %1252 = vmatprep.subr.mxu0 0.0
    %1253 = vmatpush1.msra.mxu0 0.0
    %1254 = vmatprep.subr.mxu0 0.0
    %1255 = vmatpush1.msra.mxu0 0.0
    %1256 = vmatprep.subr.mxu0 0.0
    %1257 = vmatpush1.msra.mxu0 0.0
    %1258 = vmatprep.subr.mxu0 0.0
    %1259 = vmatpush1.msra.mxu0 0.0
    %1260 = vmatprep.subr.mxu0 0.0
    %1261 = vmatpush1.msra.mxu0 0.0
    %1262 = vmatprep.subr.mxu0 0.0
    %1263 = vmatpush1.msra.mxu0 0.0
    %1264 = vmatprep.subr.mxu0 0.0
    %1265 = vmatpush1.msra.mxu0 0.0
    %1266 = vmatprep.subr.mxu0 0.0
    %1267 = vmatpush1.msra.mxu0 0.0
    %1268 = vmatprep.subr.mxu0 0.0
    %1269 = vmatpush1.msra.mxu0 0.0
    %1270 = vmatprep.subr.mxu0 0.0
    %1271 = vmatpush1.msra.mxu0 0.0
    %1272 = vmatprep.subr.mxu0 0.0
    %1273 = vmatpush1.msra.mxu0 0.0
    %1274 = vmatprep.subr.mxu0 0.0
    %1275 = vmatpush1.msra.mxu0 0.0
    %1276 = vmatprep.subr.mxu0 0.0
    %1277 = vmatpush1.msra.mxu0 0.0
    %1278 = vmatprep.mubr.f32.mxu0 0.0
    %1279 = vmatmul.mubr.f32.gmra.mrb[0].mxu0 %v1212
    %v1280 = vpop.f32.mrb[0].mxu0
    %v1281 = vadd.f32 0.0, %v1280
    %v1282 = vpop.f32.mrb[0].mxu0
    %v1283 = vadd.f32 0.0, %v1282
    %1284 = vdwg.mxu0
    %v1287 = vrot.slane %v1281, 2
    %v1288 = vrot.slane %v1283, 2
    %v1289 = vrot.slane %v1281, 3
    %v1290 = vrot.slane %v1283, 3
    %v1295 = vadd.f32 %v268, %v1287
    %v1296 = vadd.f32 %v270, %v1288
    %v1297 = vadd.f32 %v274, %v1289
    %v1298 = vadd.f32 %v276, %v1290
    %v1299 = vxor.u32 %v1295, 2147483648
    %v1300 = vxor.u32 %v1297, 2147483648
    %v1301 = vmul.f32 %v1299, 1.442695
    %v1302 = vpow.pop %v1301
    %v1303 = vmul.f32 %v1300, 1.442695
    %v1304 = vpow.pop %v1303
    %v1305 = vadd.f32 %v1302, 1.0
    %v1306 = vadd.f32 %v1304, 1.0
    %v1307 = vrcp.pop %v1305
    %v1308 = vmul.f32 1.0, %v1307
    %v1309 = vrcp.pop %v1306
    %v1310 = vmul.f32 1.0, %v1309
    %v1311 = vtanh.pop %v1296
    %v1312 = vtanh.pop %v1298
    %v1313 = vxor.u32 %v1296, 2147483648
    %v1314 = vxor.u32 %v1298, 2147483648
    %v1315 = vmul.f32 %v1313, 1.442695
    %v1316 = vpow.pop %v1315
    %v1317 = vmul.f32 %v1314, 1.442695
    %v1318 = vpow.pop %v1317
    %v1319 = vadd.f32 %v1316, 1.0
    %v1320 = vadd.f32 %v1318, 1.0
    %v1321 = vrcp.pop %v1319
    %v1322 = vmul.f32 1.0, %v1321
    %v1323 = vrcp.pop %v1320
    %v1324 = vmul.f32 1.0, %v1323
    %v1327 = vrot.slane %v1190, 7
    %v1328 = vrot.slane %v1191, 7
    %v1331 = vmul.f32 %v1308, %v1327
    %v1332 = vmul.f32 %v1310, %v1328
    %v1333 = vmul.f32 %v1308, %v1311
    %v1334 = vmul.f32 %v1310, %v1312
    %1337 = vrot.lane.b32.xlu0 %v1333, 64
    %v1338 = vpop.permute.xlu0 %1337
    %1339 = vrot.lane.b32.xlu0 %v1334, 64
    %v1340 = vpop.permute.xlu0 %1339
    %v1343 = vadd.f32 %v1331, %v1338
    %v1344 = vadd.f32 %v1332, %v1340
    %v1345 = vtanh.pop %v1343
    %v1346 = vtanh.pop %v1344
    %v1347 = vmul.f32 %v1322, %v1345
    %v1348 = vmul.f32 %v1324, %v1346
    %1350 = vrot.lane.b32.xlu0 %v1347, 64
    %v1351 = vpop.permute.xlu0 %1350
    %vm1353 = vcmask 522246
    %1354 = vst.msk [vmem:[#allocation2] sm:$0x40] %vm1353, %v1351
    %1356 = vrot.lane.b32.xlu0 %v1348, 64
    %v1357 = vpop.permute.xlu0 %1356
    %1359 = vst.msk [vmem:[#allocation2 + $0x8] sm:$0x40] %vm1353, %v1357
    %v1360 = vrot.slane %v1347, 6
    %v1361 = vrot.slane %v1348, 5
    %v1362 = vsel %vm446, %v1361, %v1360
    %1363 = vrot.lane.b32.xlu0 %v1362, 64
    %v1364 = vpop.permute.xlu0 %1363
    %v1365 = vsel %vm194, %v1364, 0
    %1367 = vmatprep.subr.mxu0 %v279
    %1368 = vmatpush1.msra.mxu0 %v278
    %1369 = vmatprep.subr.mxu0 %v281
    %1370 = vmatpush1.msra.mxu0 %v280
    %1371 = vmatprep.subr.mxu0 %v283
    %1372 = vmatpush1.msra.mxu0 %v282
    %1373 = vmatprep.subr.mxu0 %v285
    %1374 = vmatpush1.msra.mxu0 %v284
    %1375 = vmatprep.subr.mxu0 %v287
    %1376 = vmatpush1.msra.mxu0 %v286
    %1377 = vmatprep.subr.mxu0 %v289
    %1378 = vmatpush1.msra.mxu0 %v288
    %1379 = vmatprep.subr.mxu0 %v291
    %1380 = vmatpush1.msra.mxu0 %v290
    %1381 = vmatprep.subr.mxu0 %v293
    %1382 = vmatpush1.msra.mxu0 %v292
    %1383 = vmatprep.subr.mxu0 0.0
    %1384 = vmatpush1.msra.mxu0 0.0
    %1385 = vmatprep.subr.mxu0 0.0
    %1386 = vmatpush1.msra.mxu0 0.0
    %1387 = vmatprep.subr.mxu0 0.0
    %1388 = vmatpush1.msra.mxu0 0.0
    %1389 = vmatprep.subr.mxu0 0.0
    %1390 = vmatpush1.msra.mxu0 0.0
    %1391 = vmatprep.subr.mxu0 0.0
    %1392 = vmatpush1.msra.mxu0 0.0
    %1393 = vmatprep.subr.mxu0 0.0
    %1394 = vmatpush1.msra.mxu0 0.0
    %1395 = vmatprep.subr.mxu0 0.0
    %1396 = vmatpush1.msra.mxu0 0.0
    %1397 = vmatprep.subr.mxu0 0.0
    %1398 = vmatpush1.msra.mxu0 0.0
    %1399 = vmatprep.subr.mxu0 0.0
    %1400 = vmatpush1.msra.mxu0 0.0
    %1401 = vmatprep.subr.mxu0 0.0
    %1402 = vmatpush1.msra.mxu0 0.0
    %1403 = vmatprep.subr.mxu0 0.0
    %1404 = vmatpush1.msra.mxu0 0.0
    %1405 = vmatprep.subr.mxu0 0.0
    %1406 = vmatpush1.msra.mxu0 0.0
    %1407 = vmatprep.subr.mxu0 0.0
    %1408 = vmatpush1.msra.mxu0 0.0
    %1409 = vmatprep.subr.mxu0 0.0
    %1410 = vmatpush1.msra.mxu0 0.0
    %1411 = vmatprep.subr.mxu0 0.0
    %1412 = vmatpush1.msra.mxu0 0.0
    %1413 = vmatprep.subr.mxu0 0.0
    %1414 = vmatpush1.msra.mxu0 0.0
    %1415 = vmatprep.subr.mxu0 0.0
    %1416 = vmatpush1.msra.mxu0 0.0
    %1417 = vmatprep.subr.mxu0 0.0
    %1418 = vmatpush1.msra.mxu0 0.0
    %1419 = vmatprep.subr.mxu0 0.0
    %1420 = vmatpush1.msra.mxu0 0.0
    %1421 = vmatprep.subr.mxu0 0.0
    %1422 = vmatpush1.msra.mxu0 0.0
    %1423 = vmatprep.subr.mxu0 0.0
    %1424 = vmatpush1.msra.mxu0 0.0
    %1425 = vmatprep.subr.mxu0 0.0
    %1426 = vmatpush1.msra.mxu0 0.0
    %1427 = vmatprep.subr.mxu0 0.0
    %1428 = vmatpush1.msra.mxu0 0.0
    %1429 = vmatprep.subr.mxu0 0.0
    %1430 = vmatpush1.msra.mxu0 0.0
    %1431 = vmatprep.mubr.f32.mxu0 0.0
    %1432 = vmatmul.mubr.f32.gmra.mrb[0].mxu0 %v1365
    %v1433 = vpop.f32.mrb[0].mxu0
    %v1434 = vadd.f32 0.0, %v1433
    %v1435 = vpop.f32.mrb[0].mxu0
    %v1436 = vadd.f32 0.0, %v1435
    %1437 = vdwg.mxu0
    %v1440 = vrot.slane %v1434, 1
    %v1441 = vrot.slane %v1436, 1
    %v1442 = vrot.slane %v1434, 2
    %v1443 = vrot.slane %v1436, 2
    %v1448 = vadd.f32 %v268, %v1440
    %v1449 = vadd.f32 %v270, %v1441
    %v1450 = vadd.f32 %v274, %v1442
    %v1451 = vadd.f32 %v276, %v1443
    %v1452 = vxor.u32 %v1448, 2147483648
    %v1453 = vxor.u32 %v1450, 2147483648
    %v1454 = vmul.f32 %v1452, 1.442695
    %v1455 = vpow.pop %v1454
    %v1456 = vmul.f32 %v1453, 1.442695
    %v1457 = vpow.pop %v1456
    %v1458 = vadd.f32 %v1455, 1.0
    %v1459 = vadd.f32 %v1457, 1.0
    %v1460 = vrcp.pop %v1458
    %v1461 = vmul.f32 1.0, %v1460
    %v1462 = vrcp.pop %v1459
    %v1463 = vmul.f32 1.0, %v1462
    %v1464 = vtanh.pop %v1449
    %v1465 = vtanh.pop %v1451
    %v1466 = vxor.u32 %v1449, 2147483648
    %v1467 = vxor.u32 %v1451, 2147483648
    %v1468 = vmul.f32 %v1466, 1.442695
    %v1469 = vpow.pop %v1468
    %v1470 = vmul.f32 %v1467, 1.442695
    %v1471 = vpow.pop %v1470
    %v1472 = vadd.f32 %v1469, 1.0
    %v1473 = vadd.f32 %v1471, 1.0
    %v1474 = vrcp.pop %v1472
    %v1475 = vmul.f32 1.0, %v1474
    %v1476 = vrcp.pop %v1473
    %v1477 = vmul.f32 1.0, %v1476
    %v1480 = vrot.slane %v1343, 7
    %v1481 = vrot.slane %v1344, 7
    %v1484 = vmul.f32 %v1461, %v1480
    %v1485 = vmul.f32 %v1463, %v1481
    %v1486 = vmul.f32 %v1461, %v1464
    %v1487 = vmul.f32 %v1463, %v1465
    %1490 = vrot.lane.b32.xlu0 %v1486, 64
    %v1491 = vpop.permute.xlu0 %1490
    %1492 = vrot.lane.b32.xlu0 %v1487, 64
    %v1493 = vpop.permute.xlu0 %1492
    %v1496 = vadd.f32 %v1484, %v1491
    %v1497 = vadd.f32 %v1485, %v1493
    %v1498 = vtanh.pop %v1496
    %v1499 = vtanh.pop %v1497
    %v1500 = vmul.f32 %v1475, %v1498
    %v1501 = vmul.f32 %v1477, %v1499
    %1503 = vrot.lane.b32.xlu0 %v1500, 64
    %v1504 = vpop.permute.xlu0 %1503
    %vm1506 = vcmask 523271
    %1507 = vst.msk [vmem:[#allocation2] sm:$0x80] %vm1506, %v1504
    %1509 = vrot.lane.b32.xlu0 %v1501, 64
    %v1510 = vpop.permute.xlu0 %1509
    %1512 = vst.msk [vmem:[#allocation2 + $0x8] sm:$0x80] %vm1506, %v1510
    %v1513 = vrot.slane %v1501, 7
    %1514 = vrot.lane.b32.xlu0 %v1513, 64
    %v1515 = vpop.permute.xlu0 %1514
    %1517 = vst.msk [vmem:[#allocation8 - $0x7] sm:$0x80] %vm1506, %v1504
    %1518 = vst.msk [vmem:[#allocation8 + $0x1] sm:$0x1] %vm438, %v1515
    %v1521 = vrot.slane %v1497, 7
    %1522 = vrot.lane.b32.xlu0 %v1496, 64
    %v1523 = vpop.permute.xlu0 %1522
    %1524 = vrot.lane.b32.xlu0 %v1521, 64
    %v1525 = vpop.permute.xlu0 %1524
    %1528 = vst.msk [vmem:[#allocation9 - $0x7] sm:$0x80] %vm1506, %v1523
    %1529 = vst.msk [vmem:[#allocation9 + $0x1] sm:$0x1] %vm438, %v1525
    %v1530 = vld [vmem:[#allocation2] sm:$0xff]
    %v1531 = vld [vmem:[#allocation2 + $0x8] sm:$0xff]
    %v1532 = vld [vmem:[%s8] sm:$0xff]
    %v1533 = vld [vmem:[%s8 + $0x8] sm:$0xff]
    %v1534 = vld [vmem:[%s8 + $0x10] sm:$0xff]
    %v1535 = vld [vmem:[%s8 + $0x18] sm:$0xff]
    %v1536 = vld [vmem:[%s8 + $0x20] sm:$0xff]
    %v1537 = vld [vmem:[%s8 + $0x28] sm:$0xff]
    %v1538 = vld [vmem:[%s8 + $0x30] sm:$0xff]
    %v1539 = vld [vmem:[%s8 + $0x38] sm:$0xff]
    %v1540 = vld [vmem:[%s9] sm:$0x1]
    %v1542 = vlaneseq
    %v1543 = vshrl.u32 %v1542, 7
    %v1544 = vsub.s32 0, %v1543
    %v1545 = vrot.slane %v1540, %v1544
    %v1548 = vsel %vm194, %v1530, 0
    %v1551 = vsel %vm194, %v1531, 0
    %1553 = vmatprep.subr.mxu0 0.0
    %1554 = vmatpush1.msra.mxu0 %v1532
    %1555 = vmatprep.subr.mxu0 0.0
    %1556 = vmatpush1.msra.mxu0 %v1533
    %1557 = vmatprep.subr.mxu0 0.0
    %1558 = vmatpush1.msra.mxu0 %v1534
    %1559 = vmatprep.subr.mxu0 0.0
    %1560 = vmatpush1.msra.mxu0 %v1535
    %1561 = vmatprep.subr.mxu0 0.0
    %1562 = vmatpush1.msra.mxu0 %v1536
    %1563 = vmatprep.subr.mxu0 0.0
    %1564 = vmatpush1.msra.mxu0 %v1537
    %1565 = vmatprep.subr.mxu0 0.0
    %1566 = vmatpush1.msra.mxu0 %v1538
    %1567 = vmatprep.subr.mxu0 0.0
    %1568 = vmatpush1.msra.mxu0 %v1539
    %1569 = vmatprep.subr.mxu0 0.0
    %1570 = vmatpush1.msra.mxu0 0.0
    %1571 = vmatprep.subr.mxu0 0.0
    %1572 = vmatpush1.msra.mxu0 0.0
    %1573 = vmatprep.subr.mxu0 0.0
    %1574 = vmatpush1.msra.mxu0 0.0
    %1575 = vmatprep.subr.mxu0 0.0
    %1576 = vmatpush1.msra.mxu0 0.0
    %1577 = vmatprep.subr.mxu0 0.0
    %1578 = vmatpush1.msra.mxu0 0.0
    %1579 = vmatprep.subr.mxu0 0.0
    %1580 = vmatpush1.msra.mxu0 0.0
    %1581 = vmatprep.subr.mxu0 0.0
    %1582 = vmatpush1.msra.mxu0 0.0
    %1583 = vmatprep.subr.mxu0 0.0
    %1584 = vmatpush1.msra.mxu0 0.0
    %1585 = vmatprep.subr.mxu0 0.0
    %1586 = vmatpush1.msra.mxu0 0.0
    %1587 = vmatprep.subr.mxu0 0.0
    %1588 = vmatpush1.msra.mxu0 0.0
    %1589 = vmatprep.subr.mxu0 0.0
    %1590 = vmatpush1.msra.mxu0 0.0
    %1591 = vmatprep.subr.mxu0 0.0
    %1592 = vmatpush1.msra.mxu0 0.0
    %1593 = vmatprep.subr.mxu0 0.0
    %1594 = vmatpush1.msra.mxu0 0.0
    %1595 = vmatprep.subr.mxu0 0.0
    %1596 = vmatpush1.msra.mxu0 0.0
    %1597 = vmatprep.subr.mxu0 0.0
    %1598 = vmatpush1.msra.mxu0 0.0
    %1599 = vmatprep.subr.mxu0 0.0
    %1600 = vmatpush1.msra.mxu0 0.0
    %1601 = vmatprep.subr.mxu0 0.0
    %1602 = vmatpush1.msra.mxu0 0.0
    %1603 = vmatprep.subr.mxu0 0.0
    %1604 = vmatpush1.msra.mxu0 0.0
    %1605 = vmatprep.subr.mxu0 0.0
    %1606 = vmatpush1.msra.mxu0 0.0
    %1607 = vmatprep.subr.mxu0 0.0
    %1608 = vmatpush1.msra.mxu0 0.0
    %1609 = vmatprep.subr.mxu0 0.0
    %1610 = vmatpush1.msra.mxu0 0.0
    %1611 = vmatprep.subr.mxu0 0.0
    %1612 = vmatpush1.msra.mxu0 0.0
    %1613 = vmatprep.subr.mxu0 0.0
    %1614 = vmatpush1.msra.mxu0 0.0
    %1615 = vmatprep.subr.mxu0 0.0
    %1616 = vmatpush1.msra.mxu0 0.0
    %1617 = vmatprep.mubr.f32.mxu0 0.0
    %1618 = vmatmul.mubr.f32.gmra.mrb[0].mxu0 %v1548
    %v1619 = vpop.f32.mrb[0].mxu0
    %v1620 = vadd.f32 %v1545, %v1619
    %v1621 = vpop.f32.mrb[0].mxu0
    %1622 = vmatprep.mubr.f32.mxu0 0.0
    %1623 = vmatmul.mubr.f32.gmra.mrb[0].mxu0 %v1551
    %v1624 = vpop.f32.mrb[0].mxu0
    %v1625 = vadd.f32 %v1545, %v1624
    %v1626 = vpop.f32.mrb[0].mxu0
    %1627 = vdwg.mxu0
    %1628 = vst.msk [vmem:[%s10] sm:$0xff] %vm78, %v1620
    %1629 = vst.msk [vmem:[%s10 + $0x8] sm:$0xff] %vm78, %v1625
    // Predicated region
    $region50: #{tpu_custom_call.1} parent=1 // pred_check
      _
    $region51: #{tpu_custom_call.1} parent=1 // pred_check_branch
      %1631 = sbr.rel (0) target = $region53
    $region52: #{tpu_custom_call.1} parent=1 // pred_region
      _
    $region53: #{tpu_custom_call.1} parent=1 // pred_fallthru
      _
    // Predicated region
    $region54: #{tpu_custom_call.1} parent=1 // pred_check
      _
    $region55: #{tpu_custom_call.1} parent=1 // pred_check_branch
      %1633 = sbr.rel (0) target = $region57
    $region56: #{tpu_custom_call.1} parent=1 // pred_region
      %s1635 = ssub.s32 32, 32
      %1636 = vsyncadd [#allocation5], %s1635
      %s1638 = sshll.u32 [#allocation8], 4
      %s1639 = int_to_ptr.vmem [resolvable:$true] %s1638
      %1641 = dma.vmem_to_hbm [thread:$0]  %s1639, 32, %s11, [#allocation5]
    $region57: #{tpu_custom_call.1} parent=1 // pred_fallthru
      _
    // Predicated region
    $region58: #{tpu_custom_call.1} parent=1 // pred_check
      _
    $region59: #{tpu_custom_call.1} parent=1 // pred_check_branch
      %1643 = sbr.rel (0) target = $region61
    $region60: #{tpu_custom_call.1} parent=1 // pred_region
      %s1645 = ssub.s32 32, 32
      %1646 = vsyncadd [#allocation10], %s1645
      %s1648 = sshll.u32 [#allocation9], 4
      %s1649 = int_to_ptr.vmem [resolvable:$true] %s1648
      %1651 = dma.vmem_to_hbm [thread:$0]  %s1649, 32, %s12, [#allocation10]
    $region61: #{tpu_custom_call.1} parent=1 // pred_fallthru
      _
    // Predicated region
    $region62: #{tpu_custom_call.1} parent=1 // pred_check
      _
    $region63: #{tpu_custom_call.1} parent=1 // pred_check_branch
      %1653 = sbr.rel (0) target = $region65
    $region64: #{tpu_custom_call.1} parent=1 // pred_region
      _
    $region65: #{tpu_custom_call.1} parent=1 // pred_fallthru
      _
    // Predicated region
    $region66: #{tpu_custom_call.1} parent=1 // pred_check
      _
    $region67: #{tpu_custom_call.1} parent=1 // pred_check_branch
      %1655 = sbr.rel (0) target = $region69
    $region68: #{tpu_custom_call.1} parent=1 // pred_region
      %1656 = dma.done [#allocation5], 32
    $region69: #{tpu_custom_call.1} parent=1 // pred_fallthru
      _
    // Predicated region
    $region70: #{tpu_custom_call.1} parent=1 // pred_check
      _
    $region71: #{tpu_custom_call.1} parent=1 // pred_check_branch
      %1658 = sbr.rel (0) target = $region73
    $region72: #{tpu_custom_call.1} parent=1 // pred_region
      %1659 = dma.done [#allocation10], 32
    $region73: #{tpu_custom_call.1} parent=1 // pred_fallthru
      _
    %1660 = vsyncpa [#allocation4], 1
    %1661 = vsyncpa [#allocation7], 1
    %1662 = vsyncpa [#allocation5], 1
    %1663 = vsyncpa [#allocation10], 1

</llo_original>
